<compile_context>
chip_gen: v6e
topology: v6e:2x2x1
jax: 0.10.0
libtpu: 0.0.40
codegen_flags: <defaults>
</compile_context>

<pallas_src>
import math
import functools

import jax
import jax.numpy as jnp
import numpy as np
from jax.experimental import pallas as pl
from jax.experimental.pallas import tpu as pltpu

EPS = 1e-5                                  # torch BatchNorm2d default

_TILE_TARGET_BYTES = 12 * 1024 * 1024       # in+out bytes per row tile (single buffer)
_MAX_TILE_ROWS = 16384
_VMEM_MARGIN = 2 * 1024 * 1024
_MAX_FOLD = 32                              # keep MXU flop blow-up bounded (v5e roofline)


@functools.lru_cache(maxsize=1)
def _vmem_budget_bytes():
    """Generation-aware VMEM budget (v5e/v6e: 128 MiB, v7x: 64 MiB per core)."""
    cap = 64 * 1024 * 1024
    try:
        info = pltpu.get_tpu_info()
        cap = int(getattr(info, "vmem_capacity_bytes", cap)) or cap
    except Exception:
        pass
    # Leave ~25% headroom for Mosaic internal scratch / semaphores / spills.
    return max(16 * 1024 * 1024, min(int(cap * 0.75), cap - 8 * 1024 * 1024))


def _pick_fold(M, C_in, C_out, max_fold=_MAX_FOLD):
    """Lane-fold factor r: L=r*C_out multiple of 128 (lane-dense stores) and
    K_f=r*C_in >= 128 (lane-dense LHS) when possible, with M % r == 0."""
    dense = [r for r in range(1, max_fold + 1)
             if M % r == 0 and (r * C_out) % 128 == 0 and r * C_out <= 4096]
    if not dense:
        # TODO(synk): lane-sparse fallback (no suitable fold) -> masked stores, slower.
        return 1
    full_k = [r for r in dense if r * C_in >= 128]
    return min(full_k) if full_k else max(dense)


# --------------------- fused z-resident two-phase kernel ---------------------

def _fused_kernel(x_ref, w_ref, fdn_ref, fup_ref, g_ref, b_ref, o_ref,
                  z_ref, stats_ref, ss_ref, *, tm, m_valid, inv_count,
                  apply_relu, masked):
    p = pl.program_id(0)      # 0 = stats phase, 1 = apply phase
    i = pl.program_id(1)      # M-tile index

    @pl.when(p == 0)
    def _stats_phase():
        @pl.when(i == 0)
        def _():
            stats_ref[...] = jnp.zeros_like(stats_ref)
        z = jnp.dot(x_ref[...], w_ref[...], preferred_element_type=jnp.float32)
        if masked:
            rows = i * tm + jax.lax.broadcasted_iota(jnp.int32, z.shape, 0)
            zs = jnp.where(rows < m_valid, z, 0.0)
        else:
            zs = z
        start = i * tm
        if tm % 8 == 0:
            start = pl.multiple_of(start, 8)
        z_ref[pl.ds(start, tm), :] = z        # tail garbage rows are never stored to HBM
        stats_ref[0:1, :] += jnp.sum(zs, axis=0, keepdims=True)
        stats_ref[1:2, :] += jnp.sum(zs * zs, axis=0, keepdims=True)

    @pl.when(p == 1)
    def _apply_phase():
        @pl.when(i == 0)
        def _():
            # Fold per-lane-group partial sums down to per-channel statistics
            # (tiny MXU dots, no relayout), then broadcast scale/shift back up.
            mean_c = jnp.dot(stats_ref[0:1, :], fdn_ref[...],
                             preferred_element_type=jnp.float32) * inv_count
            msq_c = jnp.dot(stats_ref[1:2, :], fdn_ref[...],
                            preferred_element_type=jnp.float32) * inv_count
            var_c = jnp.maximum(msq_c - mean_c * mean_c, 0.0)
            scale_c = g_ref[...] * jax.lax.rsqrt(var_c + EPS)
            shift_c = b_ref[...] - mean_c * scale_c
            ss_ref[0:1, :] = jnp.dot(scale_c, fup_ref[...],
                                     preferred_element_type=jnp.float32)
            ss_ref[1:2, :] = jnp.dot(shift_c, fup_ref[...],
                                     preferred_element_type=jnp.float32)
        start = i * tm
        if tm % 8 == 0:
            start = pl.multiple_of(start, 8)
        y = z_ref[pl.ds(start, tm), :] * ss_ref[0:1, :] + ss_ref[1:2, :]
        if apply_relu:
            y = jnp.maximum(y, 0.0)
        o_ref[...] = y


# --------------------------- two-pass kernels ---------------------------

def _stats_kernel(x_ref, w_ref, stats_ref, *, tm, m_valid, masked):
    z = jnp.dot(x_ref[...], w_ref[...], preferred_element_type=jnp.float32)
    if masked:
        rows = pl.program_id(0) * tm + jax.lax.broadcasted_iota(jnp.int32, z.shape, 0)
        z = jnp.where(rows < m_valid, z, 0.0)
    stats_ref[0:1, :] = jnp.sum(z, axis=0, keepdims=True)
    stats_ref[1:2, :] = jnp.sum(z * z, axis=0, keepdims=True)


def _apply_kernel(x_ref, w_ref, shift_ref, o_ref, *, apply_relu):
    # scale is pre-folded into w -> epilogue is one add (+ ReLU) per element.
    z = jnp.dot(x_ref[...], w_ref[...], preferred_element_type=jnp.float32)
    y = z + shift_ref[...]
    if apply_relu:
        y = jnp.maximum(y, 0.0)
    o_ref[...] = y


# ----------------------------- layer wrapper -----------------------------

def fc_layer(x2d, w, b, gamma, beta, apply_relu, *,
             max_tile_rows=_MAX_TILE_ROWS, force_two_pass=False):
    """x2d: (M, C_in) f32 -> (M, C_out) f32.  1x1 conv (linear) + train-mode BN + ReLU.

    The conv bias `b` cancels exactly under training-mode BatchNorm (the batch
    mean is subtracted), so it is intentionally never materialized in a kernel."""
    del b  # cancels under BN; kept in the signature for interface parity
    M, C_in = x2d.shape
    C_out = w.shape[1]

    r = _pick_fold(M, C_in, C_out)
    K_f, L, M_f = r * C_in, r * C_out, M // r

    x_f = x2d.reshape(M_f, K_f)                                   # free contiguous reshape
    w_f = jnp.kron(jnp.eye(r, dtype=w.dtype), w) if r > 1 else w  # block-diag (K_f, L)

    budget = _vmem_budget_bytes()
    const_bytes = 2 * 4 * (K_f * L + 2 * L * 128 + 4 * L + 4 * C_out)
    bytes_per_row = 4 * (K_f + L)

    tm = max(8, min(_TILE_TARGET_BYTES // bytes_per_row, _MAX_TILE_ROWS, max_tile_rows))
    stream_rows = (budget - const_bytes - _VMEM_MARGIN) // (2 * bytes_per_row)
    tm = min(tm, max(8, stream_rows))
    if tm >= M_f:
        tm = M_f                         # single full block (no divisibility constraint)
    else:
        tm = max(8, (tm // 8) * 8)       # gridded blocks must be sublane-aligned
    nt = (M_f + tm - 1) // tm
    masked = (M_f % tm) != 0

    z_bytes = 4 * nt * tm * L
    fused_ok = (not force_two_pass) and (
        z_bytes + 2 * tm * bytes_per_row + const_bytes + _VMEM_MARGIN <= budget)

    if fused_ok:
        # ---- single launch: z stays resident in VMEM (read x once, write y once) ----
        lane_ch = jnp.arange(L) % C_out
        fold_dn = (lane_ch[:, None] == jnp.arange(C_out)[None, :]).astype(jnp.float32)
        fold_up = fold_dn.T
        y_f = pl.pallas_call(
            functools.partial(_fused_kernel, tm=tm, m_valid=M_f, inv_count=1.0 / M,
                              apply_relu=apply_relu, masked=masked),
            out_shape=jax.ShapeDtypeStruct((M_f, L), jnp.float32),
            grid_spec=pltpu.PrefetchScalarGridSpec(
                num_scalar_prefetch=0,
                grid=(2, nt),
                in_specs=[
                    # phase 1 keeps the x index parked on the last tile -> no refetch.
                    pl.BlockSpec((tm, K_f), lambda p, i: (i * (1 - p) + (nt - 1) * p, 0)),
                    pl.BlockSpec((K_f, L), lambda p, i: (0, 0)),
                    pl.BlockSpec((L, C_out), lambda p, i: (0, 0)),
                    pl.BlockSpec((C_out, L), lambda p, i: (0, 0)),
                    pl.BlockSpec((1, C_out), lambda p, i: (0, 0)),
                    pl.BlockSpec((1, C_out), lambda p, i: (0, 0)),
                ],
                # phase 0 parks the output index on block 0 -> no spurious writeback.
                out_specs=pl.BlockSpec((tm, L), lambda p, i: (i * p, 0)),
                scratch_shapes=[
                    pltpu.VMEM((nt * tm, L), jnp.float32),   # resident z
                    pltpu.VMEM((2, L), jnp.float32),         # (sum, sumsq)
                    pltpu.VMEM((2, L), jnp.float32),         # (scale, shift)
                ]),
            compiler_params=pltpu.CompilerParams(
                dimension_semantics=("arbitrary", "arbitrary"),
                vmem_limit_bytes=budget),
        )(x_f, w_f, fold_dn, fold_up, gamma.reshape(1, C_out), beta.reshape(1, C_out))
        return y_f.reshape(M, C_out)

    # -------- two-pass fallback: parallel stats pass + apply pass (matmul recomputed) --------
    par_params = pltpu.CompilerParams(dimension_semantics=("parallel",),
                                      vmem_limit_bytes=budget)

    partial_stats = pl.pallas_call(
        functools.partial(_stats_kernel, tm=tm, m_valid=M_f, masked=masked),
        out_shape=jax.ShapeDtypeStruct((nt, 2, L), jnp.float32),
        grid_spec=pltpu.PrefetchScalarGridSpec(
            num_scalar_prefetch=0, grid=(nt,),
            in_specs=[pl.BlockSpec((tm, K_f), lambda i: (i, 0)),
                      pl.BlockSpec((K_f, L), lambda i: (0, 0))],
            out_specs=pl.BlockSpec((None, 2, L), lambda i: (i, 0, 0))),
        compiler_params=par_params,
    )(x_f, w_f)

    # Tiny per-channel epilogue in plain JAX: combine tiles, fold lane groups,
    # build scale/shift once; fold scale into the apply weight.
    lane_sums = jnp.sum(partial_stats, axis=0)                     # (2, L)
    s = lane_sums[0].reshape(r, C_out).sum(axis=0)
    sq = lane_sums[1].reshape(r, C_out).sum(axis=0)
    mean = s / M
    var = jnp.maximum(sq / M - mean * mean, 0.0)                   # biased (training) var
    scale = gamma * jax.lax.rsqrt(var + EPS)
    shift = beta - mean * scale
    w_apply = w_f * jnp.tile(scale, r)[None, :]
    shift_f = jnp.tile(shift, r).reshape(1, L)

    y_f = pl.pallas_call(
        functools.partial(_apply_kernel, apply_relu=apply_relu),
        out_shape=jax.ShapeDtypeStruct((M_f, L), jnp.float32),
        grid_spec=pltpu.PrefetchScalarGridSpec(
            num_scalar_prefetch=0, grid=(nt,),
            in_specs=[pl.BlockSpec((tm, K_f), lambda i: (i, 0)),
                      pl.BlockSpec((K_f, L), lambda i: (0, 0)),
                      pl.BlockSpec((1, L), lambda i: (0, 0))],
            out_specs=pl.BlockSpec((tm, L), lambda i: (i, 0))),
        compiler_params=par_params,
    )(x_f, w_apply, shift_f)

    return y_f.reshape(M, C_out)


# ------------------ module-level forward / init / reference ------------------

def init_fc_params(key, input_dims, units):
    """Match PyTorch init: xavier_uniform conv weight, zero bias, BN gamma=1/beta=0."""
    params = []
    for c_in, c_out in zip(input_dims, units):
        key, wk = jax.random.split(key)
        bound = math.sqrt(6.0 / (c_in + c_out))   # xavier_uniform on (c_out, c_in, 1, 1)
        w = jax.random.uniform(wk, (c_in, c_out), jnp.float32, -bound, bound)
        b = jnp.zeros((c_out,), jnp.float32)
        gamma = jnp.ones((c_out,), jnp.float32)
        beta = jnp.zeros((c_out,), jnp.float32)
        params.append((w, b, gamma, beta))
    return params


def fc_forward(x, params, activations, **layer_kwargs):
    B, D1, D2, _ = x.shape
    h = x.reshape(B * D1 * D2, -1).astype(jnp.float32)
    for (w, b, gamma, beta), act in zip(params, activations):
        h = fc_layer(h, w, b, gamma, beta, apply_relu=(act == "relu"), **layer_kwargs)
    return h.reshape(B, D1, D2, -1)


def _reference(x, params, activations):
    B, D1, D2, _ = x.shape
    h = x.reshape(B * D1 * D2, -1).astype(jnp.float32)
    for (w, b, gamma, beta), act in zip(params, activations):
        z = h @ w + b
        mean = z.mean(axis=0)
        var = ((z - mean) ** 2).mean(axis=0)
        z = (z - mean) / jnp.sqrt(var + EPS) * gamma + beta
        if act == "relu":
            z = jnp.maximum(z, 0.0)
        h = z
    return h.reshape(B, D1, D2, -1)


if __name__ == "__main__":
    key = jax.random.PRNGKey(0)
    k_x, k_p, k_x2 = jax.random.split(key, 3)

    # FC(input_dims=[4, 32], units=[32, 16], activations=[relu, relu], bn_decay=0.1)
    B, D1, D2 = 2, 8, 8
    input_dims = [4, 32]
    units = [32, 16]
    activations = ["relu", "relu"]

    x = jax.random.normal(k_x, (B, D1, D2, input_dims[0]), jnp.float32)
    params = init_fc_params(k_p, input_dims, units)

    # 1) small shape -> fused z-resident path, single tile per layer.
    out = jax.block_until_ready(fc_forward(x, params, activations))
    ref = _reference(x, params, activations)
    np.testing.assert_allclose(np.asarray(out), np.asarray(ref), rtol=1e-4, atol=1e-4)

    x2 = jax.random.normal(k_x2, (2, 32, 32, input_dims[0]), jnp.float32)
    ref2 = _reference(x2, params, activations)

    # 2) fused path with a multi-tile grid and a ragged last tile
    #    (masked stats accumulation + clipped output stores).
    out2 = jax.block_until_ready(fc_forward(x2, params, activations, max_tile_rows=24))
    np.testing.assert_allclose(np.asarray(out2), np.asarray(ref2), rtol=1e-4, atol=1e-4)

    # 3) two-pass path (parallel partial-stats grid + apply with scale folded into w),
    #    also with a ragged last tile and no pad/slice round-trips.
    out3 = jax.block_until_ready(
        fc_forward(x2, params, activations, force_two_pass=True, max_tile_rows=24))
    np.testing.assert_allclose(np.asarray(out3), np.asarray(ref2), rtol=1e-4, atol=1e-4)

    print("KERNEL_OK")
</pallas_src>

<mosaic_0001>
module attributes {stable_mosaic.version = 11 : i64} {
  func.func @_fused_kernel(%arg0: i32, %arg1: i32, %arg2: memref<4x128xf32, #tpu.memory_space<vmem>>, %arg3: memref<128x1024xf32, #tpu.memory_space<vmem>>, %arg4: memref<1024x32xf32, #tpu.memory_space<vmem>>, %arg5: memref<32x1024xf32, #tpu.memory_space<vmem>>, %arg6: memref<1x32xf32, #tpu.memory_space<vmem>>, %arg7: memref<1x32xf32, #tpu.memory_space<vmem>>, %arg8: memref<4x1024xf32, #tpu.memory_space<vmem>>, %arg9: memref<4x1024xf32, #tpu.memory_space<vmem>>, %arg10: memref<2x1024xf32, #tpu.memory_space<vmem>>, %arg11: memref<2x1024xf32, #tpu.memory_space<vmem>>) attributes {dimension_semantics = [#tpu.dimension_semantics<arbitrary>, #tpu.dimension_semantics<arbitrary>], iteration_bounds = array<i64: 2, 1>, scalar_prefetch = 0 : i64, scratch_operands = 3 : i64, tpu.core_type = #tpu.core_type<tc>, window_params = [{transform_indices = @transform_0, window_bounds = array<i64: 4, 128>}, {pipeline_mode = #tpu.pipeline_mode<synchronous>, transform_indices = @transform_1, window_bounds = array<i64: 128, 1024>}, {pipeline_mode = #tpu.pipeline_mode<synchronous>, transform_indices = @transform_2, window_bounds = array<i64: 1024, 32>}, {pipeline_mode = #tpu.pipeline_mode<synchronous>, transform_indices = @transform_3, window_bounds = array<i64: 32, 1024>}, {pipeline_mode = #tpu.pipeline_mode<synchronous>, transform_indices = @transform_4, window_bounds = array<i64: 1, 32>}, {pipeline_mode = #tpu.pipeline_mode<synchronous>, transform_indices = @transform_5, window_bounds = array<i64: 1, 32>}, {transform_indices = @transform_6, window_bounds = array<i64: 4, 1024>}]} {
    %c0_i32 = arith.constant 0 : i32
    %0 = arith.cmpi eq, %arg0, %c0_i32 : i32
    %1 = arith.extui %0 : i1 to i32
    %c0_i32_0 = arith.constant 0 : i32
    %2 = arith.cmpi ne, %1, %c0_i32_0 : i32
    scf.if %2 {
      %c0_i32_2 = arith.constant 0 : i32
      %6 = arith.cmpi eq, %arg1, %c0_i32_2 : i32
      %7 = arith.extui %6 : i1 to i32
      %c0_i32_3 = arith.constant 0 : i32
      %8 = arith.cmpi ne, %7, %c0_i32_3 : i32
      scf.if %8 {
        %cst_17 = arith.constant 0.000000e+00 : f32
        %26 = vector.broadcast %cst_17 : f32 to vector<2x1024xf32>
        %c0_18 = arith.constant 0 : index
        %c0_19 = arith.constant 0 : index
        %27 = vector.load %arg10[%c0_18, %c0_19] : memref<2x1024xf32, #tpu.memory_space<vmem>>, vector<2x1024xf32>
        tpu.vector_store %arg10[%c0_18, %c0_19], %26 {strides = array<i32>} : memref<2x1024xf32, #tpu.memory_space<vmem>>, vector<2x1024xf32>,
      } else {
      }
      %c0 = arith.constant 0 : index
      %c0_4 = arith.constant 0 : index
      %9 = vector.load %arg2[%c0, %c0_4] : memref<4x128xf32, #tpu.memory_space<vmem>>, vector<4x128xf32>
      %c0_5 = arith.constant 0 : index
      %c0_6 = arith.constant 0 : index
      %10 = vector.load %arg3[%c0_5, %c0_6] : memref<128x1024xf32, #tpu.memory_space<vmem>>, vector<128x1024xf32>
      %cst = arith.constant dense<0.000000e+00> : vector<4x1024xf32>
      %11 = tpu.matmul %9, %10, %cst {dimension_numbers = #tpu.dot_dimension_numbers<[1], [0], [0], [1], [0, 0, 1, 1], [], []>} : vector<4x128xf32>, vector<128x1024xf32>, vector<4x1024xf32> -> vector<4x1024xf32>
      %c4_i32 = arith.constant 4 : i32
      %12 = arith.muli %arg1, %c4_i32 : i32
      %13 = arith.index_cast %12 : i32 to index
      %c0_7 = arith.constant 0 : index
      %14 = vector.load %arg9[%13, %c0_7] : memref<4x1024xf32, #tpu.memory_space<vmem>>, vector<4x1024xf32>
      tpu.vector_store %arg9[%13, %c0_7], %11 {strides = array<i32>} : memref<4x1024xf32, #tpu.memory_space<vmem>>, vector<4x1024xf32>,
      %c0_8 = arith.constant 0 : index
      %c0_9 = arith.constant 0 : index
      %15 = vector.load %arg10[%c0_8, %c0_9] : memref<2x1024xf32, #tpu.memory_space<vmem>>, vector<1x1024xf32>
      %cst_10 = arith.constant dense<0.000000e+00> : vector<1024xf32>
      %16 = vector.multi_reduction <add>, %11, %cst_10 [0] : vector<4x1024xf32> to vector<1024xf32>
      %17 = vector.shape_cast %16 : vector<1024xf32> to vector<1x1024xf32>
      %18 = arith.addf %15, %17 : vector<1x1024xf32>
      %c0_11 = arith.constant 0 : index
      %c0_12 = arith.constant 0 : index
      %19 = vector.load %arg10[%c0_11, %c0_12] : memref<2x1024xf32, #tpu.memory_space<vmem>>, vector<1x1024xf32>
      tpu.vector_store %arg10[%c0_11, %c0_12], %18 {strides = array<i32>} : memref<2x1024xf32, #tpu.memory_space<vmem>>, vector<1x1024xf32>,
      %c1 = arith.constant 1 : index
      %c0_13 = arith.constant 0 : index
      %20 = vector.load %arg10[%c1, %c0_13] : memref<2x1024xf32, #tpu.memory_space<vmem>>, vector<1x1024xf32>
      %21 = arith.mulf %11, %11 : vector<4x1024xf32>
      %cst_14 = arith.constant dense<0.000000e+00> : vector<1024xf32>
      %22 = vector.multi_reduction <add>, %21, %cst_14 [0] : vector<4x1024xf32> to vector<1024xf32>
      %23 = vector.shape_cast %22 : vector<1024xf32> to vector<1x1024xf32>
      %24 = arith.addf %20, %23 : vector<1x1024xf32>
      %c1_15 = arith.constant 1 : index
      %c0_16 = arith.constant 0 : index
      %25 = vector.load %arg10[%c1_15, %c0_16] : memref<2x1024xf32, #tpu.memory_space<vmem>>, vector<1x1024xf32>
      tpu.vector_store %arg10[%c1_15, %c0_16], %24 {strides = array<i32>} : memref<2x1024xf32, #tpu.memory_space<vmem>>, vector<1x1024xf32>,
    } else {
    }
    %c1_i32 = arith.constant 1 : i32
    %3 = arith.cmpi eq, %arg0, %c1_i32 : i32
    %4 = arith.extui %3 : i1 to i32
    %c0_i32_1 = arith.constant 0 : i32
    %5 = arith.cmpi ne, %4, %c0_i32_1 : i32
    scf.if %5 {
      %c0_i32_2 = arith.constant 0 : i32
      %6 = arith.cmpi eq, %arg1, %c0_i32_2 : i32
      %7 = arith.extui %6 : i1 to i32
      %c0_i32_3 = arith.constant 0 : i32
      %8 = arith.cmpi ne, %7, %c0_i32_3 : i32
      scf.if %8 {
        %c0_9 = arith.constant 0 : index
        %c0_10 = arith.constant 0 : index
        %21 = vector.load %arg10[%c0_9, %c0_10] : memref<2x1024xf32, #tpu.memory_space<vmem>>, vector<1x1024xf32>
        %c0_11 = arith.constant 0 : index
        %c0_12 = arith.constant 0 : index
        %22 = vector.load %arg4[%c0_11, %c0_12] : memref<1024x32xf32, #tpu.memory_space<vmem>>, vector<1024x32xf32>
        %cst_13 = arith.constant dense<0.000000e+00> : vector<1x32xf32>
        %23 = tpu.matmul %21, %22, %cst_13 {dimension_numbers = #tpu.dot_dimension_numbers<[1], [0], [0], [1], [0, 0, 1, 1], [], []>} : vector<1x1024xf32>, vector<1024x32xf32>, vector<1x32xf32> -> vector<1x32xf32>
        %cst_14 = arith.constant 7.812500e-03 : f32
        %24 = vector.broadcast %cst_14 : f32 to vector<1x32xf32>
        %25 = arith.mulf %23, %24 : vector<1x32xf32>
        %c1_15 = arith.constant 1 : index
        %c0_16 = arith.constant 0 : index
        %26 = vector.load %arg10[%c1_15, %c0_16] : memref<2x1024xf32, #tpu.memory_space<vmem>>, vector<1x1024xf32>
        %c0_17 = arith.constant 0 : index
        %c0_18 = arith.constant 0 : index
        %27 = vector.load %arg4[%c0_17, %c0_18] : memref<1024x32xf32, #tpu.memory_space<vmem>>, vector<1024x32xf32>
        %cst_19 = arith.constant dense<0.000000e+00> : vector<1x32xf32>
        %28 = tpu.matmul %26, %27, %cst_19 {dimension_numbers = #tpu.dot_dimension_numbers<[1], [0], [0], [1], [0, 0, 1, 1], [], []>} : vector<1x1024xf32>, vector<1024x32xf32>, vector<1x32xf32> -> vector<1x32xf32>
        %cst_20 = arith.constant 7.812500e-03 : f32
        %29 = vector.broadcast %cst_20 : f32 to vector<1x32xf32>
        %30 = arith.mulf %28, %29 : vector<1x32xf32>
        %31 = arith.mulf %25, %25 : vector<1x32xf32>
        %32 = arith.subf %30, %31 : vector<1x32xf32>
        %cst_21 = arith.constant 0.000000e+00 : f32
        %33 = vector.broadcast %cst_21 : f32 to vector<1x32xf32>
        %34 = arith.maximumf %32, %33 : vector<1x32xf32>
        %c0_22 = arith.constant 0 : index
        %c0_23 = arith.constant 0 : index
        %35 = vector.load %arg6[%c0_22, %c0_23] : memref<1x32xf32, #tpu.memory_space<vmem>>, vector<1x32xf32>
        %cst_24 = arith.constant 9.99999974E-6 : f32
        %36 = vector.broadcast %cst_24 : f32 to vector<1x32xf32>
        %37 = arith.addf %34, %36 : vector<1x32xf32>
        %38 = math.rsqrt %37 : vector<1x32xf32>
        %39 = arith.mulf %35, %38 : vector<1x32xf32>
        %c0_25 = arith.constant 0 : index
        %c0_26 = arith.constant 0 : index
        %40 = vector.load %arg7[%c0_25, %c0_26] : memref<1x32xf32, #tpu.memory_space<vmem>>, vector<1x32xf32>
        %41 = arith.mulf %25, %39 : vector<1x32xf32>
        %42 = arith.subf %40, %41 : vector<1x32xf32>
        %c0_27 = arith.constant 0 : index
        %c0_28 = arith.constant 0 : index
        %43 = vector.load %arg5[%c0_27, %c0_28] : memref<32x1024xf32, #tpu.memory_space<vmem>>, vector<32x1024xf32>
        %cst_29 = arith.constant dense<0.000000e+00> : vector<1x1024xf32>
        %44 = tpu.matmul %39, %43, %cst_29 {dimension_numbers = #tpu.dot_dimension_numbers<[1], [0], [0], [1], [0, 0, 1, 1], [], []>} : vector<1x32xf32>, vector<32x1024xf32>, vector<1x1024xf32> -> vector<1x1024xf32>
        %c0_30 = arith.constant 0 : index
        %c0_31 = arith.constant 0 : index
        %45 = vector.load %arg11[%c0_30, %c0_31] : memref<2x1024xf32, #tpu.memory_space<vmem>>, vector<1x1024xf32>
        tpu.vector_store %arg11[%c0_30, %c0_31], %44 {strides = array<i32>} : memref<2x1024xf32, #tpu.memory_space<vmem>>, vector<1x1024xf32>,
        %c0_32 = arith.constant 0 : index
        %c0_33 = arith.constant 0 : index
        %46 = vector.load %arg5[%c0_32, %c0_33] : memref<32x1024xf32, #tpu.memory_space<vmem>>, vector<32x1024xf32>
        %cst_34 = arith.constant dense<0.000000e+00> : vector<1x1024xf32>
        %47 = tpu.matmul %42, %46, %cst_34 {dimension_numbers = #tpu.dot_dimension_numbers<[1], [0], [0], [1], [0, 0, 1, 1], [], []>} : vector<1x32xf32>, vector<32x1024xf32>, vector<1x1024xf32> -> vector<1x1024xf32>
        %c1_35 = arith.constant 1 : index
        %c0_36 = arith.constant 0 : index
        %48 = vector.load %arg11[%c1_35, %c0_36] : memref<2x1024xf32, #tpu.memory_space<vmem>>, vector<1x1024xf32>
        tpu.vector_store %arg11[%c1_35, %c0_36], %47 {strides = array<i32>} : memref<2x1024xf32, #tpu.memory_space<vmem>>, vector<1x1024xf32>,
      } else {
      }
      %c4_i32 = arith.constant 4 : i32
      %9 = arith.muli %arg1, %c4_i32 : i32
      %10 = arith.index_cast %9 : i32 to index
      %c0 = arith.constant 0 : index
      %11 = vector.load %arg9[%10, %c0] : memref<4x1024xf32, #tpu.memory_space<vmem>>, vector<4x1024xf32>
      %c0_4 = arith.constant 0 : index
      %c0_5 = arith.constant 0 : index
      %12 = vector.load %arg11[%c0_4, %c0_5] : memref<2x1024xf32, #tpu.memory_space<vmem>>, vector<1x1024xf32>
      %13 = vector.broadcast %12 : vector<1x1024xf32> to vector<4x1024xf32>
      %14 = arith.mulf %11, %13 : vector<4x1024xf32>
      %c1 = arith.constant 1 : index
      %c0_6 = arith.constant 0 : index
      %15 = vector.load %arg11[%c1, %c0_6] : memref<2x1024xf32, #tpu.memory_space<vmem>>, vector<1x1024xf32>
      %16 = vector.broadcast %15 : vector<1x1024xf32> to vector<4x1024xf32>
      %17 = arith.addf %14, %16 : vector<4x1024xf32>
      %cst = arith.constant 0.000000e+00 : f32
      %18 = vector.broadcast %cst : f32 to vector<4x1024xf32>
      %19 = arith.maximumf %17, %18 : vector<4x1024xf32>
      %c0_7 = arith.constant 0 : index
      %c0_8 = arith.constant 0 : index
      %20 = vector.load %arg8[%c0_7, %c0_8] : memref<4x1024xf32, #tpu.memory_space<vmem>>, vector<4x1024xf32>
      tpu.vector_store %arg8[%c0_7, %c0_8], %19 {strides = array<i32>} : memref<4x1024xf32, #tpu.memory_space<vmem>>, vector<4x1024xf32>,
    } else {
    }
    return
  }
  func.func @transform_0(%arg0: i32, %arg1: i32) -> (i32, i32) {
    %c1_i32 = arith.constant 1 : i32
    %0 = arith.subi %c1_i32, %arg0 : i32
    %1 = arith.muli %arg1, %0 : i32
    %c0_i32 = arith.constant 0 : i32
    %2 = arith.muli %c0_i32, %arg0 : i32
    %3 = arith.addi %1, %2 : i32
    %c0_i32_0 = arith.constant 0 : i32
    %c0_i32_1 = arith.constant 0 : i32
    return %3, %c0_i32_0 : i32, i32
  }
  func.func @transform_1(%arg0: i32, %arg1: i32) -> (i32, i32) {
    %c0_i32 = arith.constant 0 : i32
    %c0_i32_0 = arith.constant 0 : i32
    %c0_i32_1 = arith.constant 0 : i32
    return %c0_i32, %c0_i32_0 : i32, i32
  }
  func.func @transform_2(%arg0: i32, %arg1: i32) -> (i32, i32) {
    %c0_i32 = arith.constant 0 : i32
    %c0_i32_0 = arith.constant 0 : i32
    %c0_i32_1 = arith.constant 0 : i32
    return %c0_i32, %c0_i32_0 : i32, i32
  }
  func.func @transform_3(%arg0: i32, %arg1: i32) -> (i32, i32) {
    %c0_i32 = arith.constant 0 : i32
    %c0_i32_0 = arith.constant 0 : i32
    %c0_i32_1 = arith.constant 0 : i32
    return %c0_i32, %c0_i32_0 : i32, i32
  }
  func.func @transform_4(%arg0: i32, %arg1: i32) -> (i32, i32) {
    %c0_i32 = arith.constant 0 : i32
    %c0_i32_0 = arith.constant 0 : i32
    %c0_i32_1 = arith.constant 0 : i32
    return %c0_i32, %c0_i32_0 : i32, i32
  }
  func.func @transform_5(%arg0: i32, %arg1: i32) -> (i32, i32) {
    %c0_i32 = arith.constant 0 : i32
    %c0_i32_0 = arith.constant 0 : i32
    %c0_i32_1 = arith.constant 0 : i32
    return %c0_i32, %c0_i32_0 : i32, i32
  }
  func.func @transform_6(%arg0: i32, %arg1: i32) -> (i32, i32) {
    %0 = arith.muli %arg1, %arg0 : i32
    %c0_i32 = arith.constant 0 : i32
    %c0_i32_0 = arith.constant 0 : i32
    return %0, %c0_i32 : i32, i32
  }
}

</mosaic_0001>

<llo_original>
// kernel: tpu_custom_call.1
$region0: #{tpu_custom_call.1}
  #allocation0 [shape = 'u32[]', space=smem, size = 0x4, offset = 0x4, fixed_abs, tag = 'smem constant byte address 0x4 - core index']
  #allocation1 [shape = 'u32[144,128]{1,0:T(1,128)}', space=vmem, size = 0x12000, scoped, tag = 'internal scratch']
  #allocation2 [shape = 'f32[4,1024]{1,0:T(4,128)}', space=vmem, size = 0x4000, scoped, tag = 'scratch operand']
  #allocation3 [shape = 'f32[2,1024]{1,0:T(2,128)}', space=vmem, size = 0x2000, scoped, tag = 'scratch operand']
  #allocation4 [shape = 'f32[2,1024]{1,0:T(2,128)}', space=vmem, size = 0x2000, scoped, tag = 'scratch operand']
  %s0 = inlined_call_operand.hbm [shape: f32[4,128], index: 0, kind: input, shape index: {}]
  %s1 = inlined_call_operand.vmem [shape: f32[128,1024], index: 1, kind: input, shape index: {}]
  %s2 = inlined_call_operand.vmem [shape: f32[1024,32], index: 2, kind: input, shape index: {}]
  %s3 = inlined_call_operand.vmem [shape: f32[32,1024], index: 3, kind: input, shape index: {}]
  %s4 = inlined_call_operand.vmem [shape: f32[1,32], index: 4, kind: input, shape index: {}]
  %s5 = inlined_call_operand.hbm [shape: f32[1,32], index: 5, kind: input, shape index: {}]
  %s6 = inlined_call_operand.hbm [shape: f32[4,1024], index: 6, kind: output, shape index: {}]
  %s7 = sld [smem:[#allocation0]]
  $region81: #{tpu_custom_call.1} parent=0
    _
  %s9 = ssub.s32 1, %s7
  %s10 = scalar_select 0, %s9, %s7
  $region1: #{tpu_custom_call.1} parent=0
    #allocation5 [shape = 'u8[4096]{0}', space=vmem, size = 0x1000, scoped, tag = 'input window, operand 0']
    #allocation6 [shape = 's32[2]{0}', space=sflag, size = 0x8, scoped, tag = 'scoped memory for tpu_custom_call.1']
    #allocation7 [shape = 's32[2]{0}', space=sflag, size = 0x8, scoped, tag = 'scoped memory for tpu_custom_call.1']
    #allocation8 [shape = 'u8[512]{0}', space=vmem, size = 0x400, scoped, tag = 'input window, operand 5, single buffered']
    #allocation9 [shape = 's32[1]{0}', space=sflag, size = 0x4, scoped, tag = 'scoped memory for tpu_custom_call.1']
    #allocation10 [shape = 'u8[32768]{0}', space=vmem, size = 0x8000, scoped, tag = 'output window, operand 0']
    %11 = vsyncpa [#allocation6], 0
    %s12 = scalar_lea.sflag [#allocation6], 1
    %13 = vsyncpa %s12, 0
    %14 = vsyncpa [#allocation9], 0
    %15 = vsyncpa [#allocation7], 0
    %s16 = scalar_lea.sflag [#allocation7], 1
    %17 = vsyncpa %s16, 0
    loop: start=0, step=1, limit=4
    $region2: #{tpu_custom_call.1} parent=1 // loop_pre_header
      _
    $region3: #{tpu_custom_call.1} parent=1 // loop_header
      %s19 = sphi 0, %s23
      %p20 = scmp.ge.s32.totalorder %s19, 4
      %s26 = sphi 0, %s38
      %s27 = sphi 0, %s34
      %s28 = sphi 0, %s26
      %s29 = sphi 0, %s27
      %s30 = sphi 0, %s28
      %s31 = sphi 0, %s29
      %s45 = sphi 0, %s47
      %s48 = sphi 0, %s45
      %s49 = sphi 0, %s48
      %s65 = sphi 0, %s49
      %s69 = sphi 0, %s69
      %s71 = sphi 0, %s69
      %s72 = sphi 0, %s71
      %s86 = sphi 0, %s72
      %s90 = sphi 0, %s90
      %s92 = sphi 0, %s90
      %s93 = sphi 0, %s92
      %s107 = sphi 0, %s93
      %s111 = sphi 0, %s111
      %s113 = sphi 0, %s111
      %s114 = sphi 0, %s113
      %s128 = sphi 0, %s114
      %s132 = sphi 0, %s132
      %s134 = sphi 0, %s132
      %s135 = sphi 0, %s134
      %s149 = sphi 0, %s135
      %s153 = sphi 0, %s153
      %s155 = sphi 0, %s153
      %s156 = sphi 0, %s155
      %s170 = sphi 0, %s156
      %s178 = sphi 0, %s180
      %s181 = sphi 0, %s178
      %s182 = sphi 0, %s181
      %s198 = sphi 0, %s182
    $region4: #{tpu_custom_call.1} parent=1 // loop_header_branch
      %22 = sbr.rel (%p20) target = $region8
    $region5: #{tpu_custom_call.1} parent=1 // loop_body
      %s24 = ssub.s32 %s19, 1
      %s25 = ssub.s32 %s19, 2
      %s32 = sadd.s32 1, %s27
      %p33 = scmp.ge.s32.totalorder %s32, 1
      %s34 = scalar_select %p33, 0, %s32
      %s35 = sadd.s32 1, %s26
      %s36 = scalar_select %p33, %s35, %s26
      %p37 = scmp.ge.s32.totalorder %s36, 2
      %s38 = scalar_select %p37, 0, %s36
      %s39 = ssub.s32 1, %s26
      %s40 = smul.u32 %s27, %s39
      %s41 = ssub.s32 1, %s38
      %s42 = smul.u32 %s34, %s41
      %s43 = ssub.s32 %s40, %s42
      %p44 = scmp.eq.s32.totalorder %s43, 0
      %s46 = sadd.s32 %s45, 1
      %s47 = scalar_select %p44, %s45, %s46
      %p50 = pneg %p44
      %p51 = scmp.eq.s32.totalorder %s19, 1
      %p52 = por %p50, %p51
      %p53 = scmp.ne.s32.totalorder %s45, %s48
      %p54 = scmp.eq.s32.totalorder %s19, 0
      %p55 = por %p53, %p54
      %p56 = scmp.ne.s32.totalorder %s45, %s48
      %p57 = scmp.eq.s32.totalorder %s24, 1
      %p58 = por %p56, %p57
      %p59 = scmp.ne.s32.totalorder %s48, %s49
      %p60 = scmp.eq.s32.totalorder %s24, 0
      %p61 = por %p59, %p60
      %p62 = scmp.ne.s32.totalorder %s48, %s49
      %p63 = scmp.eq.s32.totalorder %s25, 1
      %p64 = por %p62, %p63
      %p66 = scmp.ne.s32.totalorder %s49, %s65
      %p67 = scmp.eq.s32.totalorder %s25, 0
      %p68 = por %p66, %p67
      %s70 = sadd.s32 %s69, 1
      %p73 = scmp.eq.s32.totalorder %s19, 1
      %p74 = scmp.ne.s32.totalorder %s69, %s71
      %p75 = scmp.eq.s32.totalorder %s19, 0
      %p76 = por %p74, %p75
      %p77 = scmp.ne.s32.totalorder %s69, %s71
      %p78 = scmp.eq.s32.totalorder %s24, 1
      %p79 = por %p77, %p78
      %p80 = scmp.ne.s32.totalorder %s71, %s72
      %p81 = scmp.eq.s32.totalorder %s24, 0
      %p82 = por %p80, %p81
      %p83 = scmp.ne.s32.totalorder %s71, %s72
      %p84 = scmp.eq.s32.totalorder %s25, 1
      %p85 = por %p83, %p84
      %p87 = scmp.ne.s32.totalorder %s72, %s86
      %p88 = scmp.eq.s32.totalorder %s25, 0
      %p89 = por %p87, %p88
      %s91 = sadd.s32 %s90, 1
      %p94 = scmp.eq.s32.totalorder %s19, 1
      %p95 = scmp.ne.s32.totalorder %s90, %s92
      %p96 = scmp.eq.s32.totalorder %s19, 0
      %p97 = por %p95, %p96
      %p98 = scmp.ne.s32.totalorder %s90, %s92
      %p99 = scmp.eq.s32.totalorder %s24, 1
      %p100 = por %p98, %p99
      %p101 = scmp.ne.s32.totalorder %s92, %s93
      %p102 = scmp.eq.s32.totalorder %s24, 0
      %p103 = por %p101, %p102
      %p104 = scmp.ne.s32.totalorder %s92, %s93
      %p105 = scmp.eq.s32.totalorder %s25, 1
      %p106 = por %p104, %p105
      %p108 = scmp.ne.s32.totalorder %s93, %s107
      %p109 = scmp.eq.s32.totalorder %s25, 0
      %p110 = por %p108, %p109
      %s112 = sadd.s32 %s111, 1
      %p115 = scmp.eq.s32.totalorder %s19, 1
      %p116 = scmp.ne.s32.totalorder %s111, %s113
      %p117 = scmp.eq.s32.totalorder %s19, 0
      %p118 = por %p116, %p117
      %p119 = scmp.ne.s32.totalorder %s111, %s113
      %p120 = scmp.eq.s32.totalorder %s24, 1
      %p121 = por %p119, %p120
      %p122 = scmp.ne.s32.totalorder %s113, %s114
      %p123 = scmp.eq.s32.totalorder %s24, 0
      %p124 = por %p122, %p123
      %p125 = scmp.ne.s32.totalorder %s113, %s114
      %p126 = scmp.eq.s32.totalorder %s25, 1
      %p127 = por %p125, %p126
      %p129 = scmp.ne.s32.totalorder %s114, %s128
      %p130 = scmp.eq.s32.totalorder %s25, 0
      %p131 = por %p129, %p130
      %s133 = sadd.s32 %s132, 1
      %p136 = scmp.eq.s32.totalorder %s19, 1
      %p137 = scmp.ne.s32.totalorder %s132, %s134
      %p138 = scmp.eq.s32.totalorder %s19, 0
      %p139 = por %p137, %p138
      %p140 = scmp.ne.s32.totalorder %s132, %s134
      %p141 = scmp.eq.s32.totalorder %s24, 1
      %p142 = por %p140, %p141
      %p143 = scmp.ne.s32.totalorder %s134, %s135
      %p144 = scmp.eq.s32.totalorder %s24, 0
      %p145 = por %p143, %p144
      %p146 = scmp.ne.s32.totalorder %s134, %s135
      %p147 = scmp.eq.s32.totalorder %s25, 1
      %p148 = por %p146, %p147
      %p150 = scmp.ne.s32.totalorder %s135, %s149
      %p151 = scmp.eq.s32.totalorder %s25, 0
      %p152 = por %p150, %p151
      %s154 = sadd.s32 %s153, 1
      %p157 = scmp.eq.s32.totalorder %s19, 1
      %p158 = scmp.ne.s32.totalorder %s153, %s155
      %p159 = scmp.eq.s32.totalorder %s19, 0
      %p160 = por %p158, %p159
      %p161 = scmp.ne.s32.totalorder %s153, %s155
      %p162 = scmp.eq.s32.totalorder %s24, 1
      %p163 = por %p161, %p162
      %p164 = scmp.ne.s32.totalorder %s155, %s156
      %p165 = scmp.eq.s32.totalorder %s24, 0
      %p166 = por %p164, %p165
      %p167 = scmp.ne.s32.totalorder %s155, %s156
      %p168 = scmp.eq.s32.totalorder %s25, 1
      %p169 = por %p167, %p168
      %p171 = scmp.ne.s32.totalorder %s156, %s170
      %p172 = scmp.eq.s32.totalorder %s25, 0
      %p173 = por %p171, %p172
      %s174 = smul.u32 %s27, %s26
      %s175 = smul.u32 %s34, %s38
      %s176 = ssub.s32 %s174, %s175
      %p177 = scmp.eq.s32.totalorder %s176, 0
      %s179 = sadd.s32 %s178, 1
      %s180 = scalar_select %p177, %s178, %s179
      %p183 = pneg %p177
      %p184 = scmp.eq.s32.totalorder %s19, 1
      %p185 = por %p183, %p184
      %p186 = scmp.ne.s32.totalorder %s178, %s181
      %p187 = scmp.eq.s32.totalorder %s19, 0
      %p188 = por %p186, %p187
      %p189 = scmp.ne.s32.totalorder %s178, %s181
      %p190 = scmp.eq.s32.totalorder %s24, 1
      %p191 = por %p189, %p190
      %p192 = scmp.ne.s32.totalorder %s181, %s182
      %p193 = scmp.eq.s32.totalorder %s24, 0
      %p194 = por %p192, %p193
      %p195 = scmp.ne.s32.totalorder %s181, %s182
      %p196 = scmp.eq.s32.totalorder %s25, 1
      %p197 = por %p195, %p196
      %p199 = scmp.ne.s32.totalorder %s182, %s198
      %p200 = scmp.eq.s32.totalorder %s25, 0
      %p201 = por %p199, %p200
      %p202 = scmp.le.s32.totalorder 1, %s19
      %p203 = scmp.lt.s32.totalorder %s19, 3
      %p204 = pnand %p202, %p203
      %p205 = pneg %p204
      // Predicated region
      $region9: #{tpu_custom_call.1} parent=5 // pred_check
        _
      $region10: #{tpu_custom_call.1} parent=5 // pred_check_branch
        %207 = sbr.rel (%p204) target = $region12
      $region11: #{tpu_custom_call.1} parent=5 // pred_region
        %s208 = ssub.s32 %s19, 1
        // Predicated region
        $region13: #{tpu_custom_call.1} parent=11 // pred_check
          %p209 = pneg %p82
        $region14: #{tpu_custom_call.1} parent=11 // pred_check_branch
          %211 = sbr.rel (%p209) target = $region16
        $region15: #{tpu_custom_call.1} parent=11 // pred_region
          _
        $region16: #{tpu_custom_call.1} parent=11 // pred_fallthru
          _
        // Predicated region
        $region17: #{tpu_custom_call.1} parent=11 // pred_check
          %p212 = pneg %p103
        $region18: #{tpu_custom_call.1} parent=11 // pred_check_branch
          %214 = sbr.rel (%p212) target = $region20
        $region19: #{tpu_custom_call.1} parent=11 // pred_region
          _
        $region20: #{tpu_custom_call.1} parent=11 // pred_fallthru
          _
        // Predicated region
        $region21: #{tpu_custom_call.1} parent=11 // pred_check
          %p215 = pneg %p124
        $region22: #{tpu_custom_call.1} parent=11 // pred_check_branch
          %217 = sbr.rel (%p215) target = $region24
        $region23: #{tpu_custom_call.1} parent=11 // pred_region
          _
        $region24: #{tpu_custom_call.1} parent=11 // pred_fallthru
          _
        // Predicated region
        $region25: #{tpu_custom_call.1} parent=11 // pred_check
          %p218 = pneg %p145
        $region26: #{tpu_custom_call.1} parent=11 // pred_check_branch
          %220 = sbr.rel (%p218) target = $region28
        $region27: #{tpu_custom_call.1} parent=11 // pred_region
          _
        $region28: #{tpu_custom_call.1} parent=11 // pred_fallthru
          _
        // Predicated region
        $region29: #{tpu_custom_call.1} parent=11 // pred_check
          %p221 = pneg %p166
        $region30: #{tpu_custom_call.1} parent=11 // pred_check_branch
          %223 = sbr.rel (%p221) target = $region32
        $region31: #{tpu_custom_call.1} parent=11 // pred_region
          %s225 = ssub.s32 16, 16
          %226 = vsyncadd [#allocation9], %s225
          %s228 = sshll.u32 [#allocation8], 4
          %s229 = int_to_ptr.vmem [resolvable:$true] %s228
          %231 = dma.hbm_to_vmem [thread:$0]  %s5, 16, %s229, [#allocation9]
        $region32: #{tpu_custom_call.1} parent=11 // pred_fallthru
          _
      $region12: #{tpu_custom_call.1} parent=5 // pred_fallthru
        _
      %p232 = scmp.lt.s32.totalorder %s19, 2
      // Predicated region
      $region33: #{tpu_custom_call.1} parent=5 // pred_check
        %p233 = pneg %p232
      $region34: #{tpu_custom_call.1} parent=5 // pred_check_branch
        %235 = sbr.rel (%p233) target = $region36
      $region35: #{tpu_custom_call.1} parent=5 // pred_region
        // Predicated region
        $region37: #{tpu_custom_call.1} parent=35 // pred_check
          %p236 = pneg %p55
        $region38: #{tpu_custom_call.1} parent=35 // pred_check_branch
          %238 = sbr.rel (%p236) target = $region40
        $region39: #{tpu_custom_call.1} parent=35 // pred_region
          %s239 = sand.u32 %s45, 1
          %s240 = scalar_lea.sflag [#allocation6], %s239
          %s241 = sand.u32 %s45, 1
          %s242 = smul.addr %s241, 4
          %s243 = scalar_lea.vmem [#allocation5], %s242
          %s244 = ssub.s32 1, %s26
          %s245 = smul.u32 %s27, %s244
          %s247 = ssub.s32 64, 64
          %248 = vsyncadd %s240, %s247
          %s249 = smul.addr %s245, 64
          %s250 = scalar_lea.hbm %s0, %s249
          %s252 = sshll.u32 %s243, 4
          %s253 = int_to_ptr.vmem [resolvable:$true] %s252
          %255 = dma.hbm_to_vmem [thread:$0]  %s250, 64, %s253, %s240
        $region40: #{tpu_custom_call.1} parent=35 // pred_fallthru
          _
      $region36: #{tpu_custom_call.1} parent=5 // pred_fallthru
        _
      %p256 = scmp.le.s32.totalorder 1, %s19
      %p257 = scmp.lt.s32.totalorder %s19, 3
      %p258 = pnand %p256, %p257
      %p259 = pneg %p258
      // Predicated region
      $region41: #{tpu_custom_call.1} parent=5 // pred_check
        _
      $region42: #{tpu_custom_call.1} parent=5 // pred_check_branch
        %261 = sbr.rel (%p258) target = $region44
      $region43: #{tpu_custom_call.1} parent=5 // pred_region
        %s262 = ssub.s32 %s19, 1
        %s263 = sand.u32 %s48, 1
        %s264 = scalar_lea.sflag [#allocation6], %s263
        %s265 = sand.u32 %s48, 1
        %s266 = smul.addr %s265, 4
        %s267 = scalar_lea.vmem [#allocation5], %s266
        // Predicated region
        $region45: #{tpu_custom_call.1} parent=43 // pred_check
          %p268 = pneg %p61
        $region46: #{tpu_custom_call.1} parent=43 // pred_check_branch
          %270 = sbr.rel (%p268) target = $region48
        $region47: #{tpu_custom_call.1} parent=43 // pred_region
          %271 = dma.done %s264, 64
        $region48: #{tpu_custom_call.1} parent=43 // pred_fallthru
          _
        // Predicated region
        $region49: #{tpu_custom_call.1} parent=43 // pred_check
          %p272 = pneg %p166
        $region50: #{tpu_custom_call.1} parent=43 // pred_check_branch
          %274 = sbr.rel (%p272) target = $region52
        $region51: #{tpu_custom_call.1} parent=43 // pred_region
          %275 = dma.done [#allocation9], 16
        $region52: #{tpu_custom_call.1} parent=43 // pred_fallthru
          _
        %s276 = sand.u32 %s48, 1
        %s277 = scalar_lea.sflag [#allocation6], %s276
        %s278 = sand.u32 %s48, 1
        %s279 = smul.addr %s278, 4
        %s280 = scalar_lea.vmem [#allocation5], %s279
        %p281 = pneg %p61
        %p282 = pneg %p58
        %p283 = pneg %p82
        %p284 = pneg %p79
        %p285 = pneg %p103
        %p286 = pneg %p100
        %p287 = pneg %p124
        %p288 = pneg %p121
        %p289 = pneg %p145
        %p290 = pneg %p142
        %p291 = pneg %p166
        %p292 = pneg %p163
        %p293 = pneg %p194
        %p294 = pneg %p191
        %s295 = sand.u32 %s181, 1
        %s296 = scalar_lea.sflag [#allocation7], %s295
        %s297 = sand.u32 %s181, 1
        %s298 = smul.addr %s297, 32
        %s299 = scalar_lea.vmem [#allocation10], %s298
        %s300 = ssub.s32 1, %s28
        %s301 = smul.u32 %s29, %s300
        %s302 = smul.u32 %s29, %s28
        %p303 = scmp.eq.s32.totalorder %s28, 0
        // Predicated region
        $region53: #{tpu_custom_call.1} parent=43 // pred_check
          %p304 = pneg %p303
        $region54: #{tpu_custom_call.1} parent=43 // pred_check_branch
          %306 = sbr.rel (%p304) target = $region56
        $region55: #{tpu_custom_call.1} parent=43 // pred_region
          %p307 = scmp.eq.s32.totalorder %s29, 0
          // Predicated region
          $region57: #{tpu_custom_call.1} parent=55 // pred_check
            %p308 = pneg %p307
          $region58: #{tpu_custom_call.1} parent=55 // pred_check_branch
            %310 = sbr.rel (%p308) target = $region60
          $region59: #{tpu_custom_call.1} parent=55 // pred_region
            %311 = vst [vmem:[#allocation3] sm:$0xff] 0.0
            %312 = vst [vmem:[#allocation3 + $0x8] sm:$0xff] 0.0
          $region60: #{tpu_custom_call.1} parent=55 // pred_fallthru
            _
          %v313 = vld [vmem:[%s267] sm:$0xf]
          %v314 = vld [vmem:[%s1] sm:$0xff]
          %v315 = vld [vmem:[%s1 + $0x8] sm:$0xff]
          %v316 = vld [vmem:[%s1 + $0x10] sm:$0xff]
          %v317 = vld [vmem:[%s1 + $0x18] sm:$0xff]
          %v318 = vld [vmem:[%s1 + $0x20] sm:$0xff]
          %v319 = vld [vmem:[%s1 + $0x28] sm:$0xff]
          %v320 = vld [vmem:[%s1 + $0x30] sm:$0xff]
          %v321 = vld [vmem:[%s1 + $0x38] sm:$0xff]
          %v322 = vld [vmem:[%s1 + $0x40] sm:$0xff]
          %v323 = vld [vmem:[%s1 + $0x48] sm:$0xff]
          %v324 = vld [vmem:[%s1 + $0x50] sm:$0xff]
          %v325 = vld [vmem:[%s1 + $0x58] sm:$0xff]
          %v326 = vld [vmem:[%s1 + $0x60] sm:$0xff]
          %v327 = vld [vmem:[%s1 + $0x68] sm:$0xff]
          %v328 = vld [vmem:[%s1 + $0x70] sm:$0xff]
          %v329 = vld [vmem:[%s1 + $0x78] sm:$0xff]
          %v330 = vld [vmem:[%s1 + $0x80] sm:$0xff]
          %v331 = vld [vmem:[%s1 + $0x88] sm:$0xff]
          %v332 = vld [vmem:[%s1 + $0x90] sm:$0xff]
          %v333 = vld [vmem:[%s1 + $0x98] sm:$0xff]
          %v334 = vld [vmem:[%s1 + $0xa0] sm:$0xff]
          %v335 = vld [vmem:[%s1 + $0xa8] sm:$0xff]
          %v336 = vld [vmem:[%s1 + $0xb0] sm:$0xff]
          %v337 = vld [vmem:[%s1 + $0xb8] sm:$0xff]
          %v338 = vld [vmem:[%s1 + $0xc0] sm:$0xff]
          %v339 = vld [vmem:[%s1 + $0xc8] sm:$0xff]
          %v340 = vld [vmem:[%s1 + $0xd0] sm:$0xff]
          %v341 = vld [vmem:[%s1 + $0xd8] sm:$0xff]
          %v342 = vld [vmem:[%s1 + $0xe0] sm:$0xff]
          %v343 = vld [vmem:[%s1 + $0xe8] sm:$0xff]
          %v344 = vld [vmem:[%s1 + $0xf0] sm:$0xff]
          %v345 = vld [vmem:[%s1 + $0xf8] sm:$0xff]
          %v346 = vld [vmem:[%s1 + $0x100] sm:$0xff]
          %v347 = vld [vmem:[%s1 + $0x108] sm:$0xff]
          %v348 = vld [vmem:[%s1 + $0x110] sm:$0xff]
          %v349 = vld [vmem:[%s1 + $0x118] sm:$0xff]
          %v350 = vld [vmem:[%s1 + $0x120] sm:$0xff]
          %v351 = vld [vmem:[%s1 + $0x128] sm:$0xff]
          %v352 = vld [vmem:[%s1 + $0x130] sm:$0xff]
          %v353 = vld [vmem:[%s1 + $0x138] sm:$0xff]
          %v354 = vld [vmem:[%s1 + $0x140] sm:$0xff]
          %v355 = vld [vmem:[%s1 + $0x148] sm:$0xff]
          %v356 = vld [vmem:[%s1 + $0x150] sm:$0xff]
          %v357 = vld [vmem:[%s1 + $0x158] sm:$0xff]
          %v358 = vld [vmem:[%s1 + $0x160] sm:$0xff]
          %v359 = vld [vmem:[%s1 + $0x168] sm:$0xff]
          %v360 = vld [vmem:[%s1 + $0x170] sm:$0xff]
          %v361 = vld [vmem:[%s1 + $0x178] sm:$0xff]
          %v362 = vld [vmem:[%s1 + $0x180] sm:$0xff]
          %v363 = vld [vmem:[%s1 + $0x188] sm:$0xff]
          %v364 = vld [vmem:[%s1 + $0x190] sm:$0xff]
          %v365 = vld [vmem:[%s1 + $0x198] sm:$0xff]
          %v366 = vld [vmem:[%s1 + $0x1a0] sm:$0xff]
          %v367 = vld [vmem:[%s1 + $0x1a8] sm:$0xff]
          %v368 = vld [vmem:[%s1 + $0x1b0] sm:$0xff]
          %v369 = vld [vmem:[%s1 + $0x1b8] sm:$0xff]
          %v370 = vld [vmem:[%s1 + $0x1c0] sm:$0xff]
          %v371 = vld [vmem:[%s1 + $0x1c8] sm:$0xff]
          %v372 = vld [vmem:[%s1 + $0x1d0] sm:$0xff]
          %v373 = vld [vmem:[%s1 + $0x1d8] sm:$0xff]
          %v374 = vld [vmem:[%s1 + $0x1e0] sm:$0xff]
          %v375 = vld [vmem:[%s1 + $0x1e8] sm:$0xff]
          %v376 = vld [vmem:[%s1 + $0x1f0] sm:$0xff]
          %v377 = vld [vmem:[%s1 + $0x1f8] sm:$0xff]
          %v378 = vld [vmem:[%s1 + $0x200] sm:$0xff]
          %v379 = vld [vmem:[%s1 + $0x208] sm:$0xff]
          %v380 = vld [vmem:[%s1 + $0x210] sm:$0xff]
          %v381 = vld [vmem:[%s1 + $0x218] sm:$0xff]
          %v382 = vld [vmem:[%s1 + $0x220] sm:$0xff]
          %v383 = vld [vmem:[%s1 + $0x228] sm:$0xff]
          %v384 = vld [vmem:[%s1 + $0x230] sm:$0xff]
          %v385 = vld [vmem:[%s1 + $0x238] sm:$0xff]
          %v386 = vld [vmem:[%s1 + $0x240] sm:$0xff]
          %v387 = vld [vmem:[%s1 + $0x248] sm:$0xff]
          %v388 = vld [vmem:[%s1 + $0x250] sm:$0xff]
          %v389 = vld [vmem:[%s1 + $0x258] sm:$0xff]
          %v390 = vld [vmem:[%s1 + $0x260] sm:$0xff]
          %v391 = vld [vmem:[%s1 + $0x268] sm:$0xff]
          %v392 = vld [vmem:[%s1 + $0x270] sm:$0xff]
          %v393 = vld [vmem:[%s1 + $0x278] sm:$0xff]
          %v394 = vld [vmem:[%s1 + $0x280] sm:$0xff]
          %v395 = vld [vmem:[%s1 + $0x288] sm:$0xff]
          %v396 = vld [vmem:[%s1 + $0x290] sm:$0xff]
          %v397 = vld [vmem:[%s1 + $0x298] sm:$0xff]
          %v398 = vld [vmem:[%s1 + $0x2a0] sm:$0xff]
          %v399 = vld [vmem:[%s1 + $0x2a8] sm:$0xff]
          %v400 = vld [vmem:[%s1 + $0x2b0] sm:$0xff]
          %v401 = vld [vmem:[%s1 + $0x2b8] sm:$0xff]
          %v402 = vld [vmem:[%s1 + $0x2c0] sm:$0xff]
          %v403 = vld [vmem:[%s1 + $0x2c8] sm:$0xff]
          %v404 = vld [vmem:[%s1 + $0x2d0] sm:$0xff]
          %v405 = vld [vmem:[%s1 + $0x2d8] sm:$0xff]
          %v406 = vld [vmem:[%s1 + $0x2e0] sm:$0xff]
          %v407 = vld [vmem:[%s1 + $0x2e8] sm:$0xff]
          %v408 = vld [vmem:[%s1 + $0x2f0] sm:$0xff]
          %v409 = vld [vmem:[%s1 + $0x2f8] sm:$0xff]
          %v410 = vld [vmem:[%s1 + $0x300] sm:$0xff]
          %v411 = vld [vmem:[%s1 + $0x308] sm:$0xff]
          %v412 = vld [vmem:[%s1 + $0x310] sm:$0xff]
          %v413 = vld [vmem:[%s1 + $0x318] sm:$0xff]
          %v414 = vld [vmem:[%s1 + $0x320] sm:$0xff]
          %v415 = vld [vmem:[%s1 + $0x328] sm:$0xff]
          %v416 = vld [vmem:[%s1 + $0x330] sm:$0xff]
          %v417 = vld [vmem:[%s1 + $0x338] sm:$0xff]
          %v418 = vld [vmem:[%s1 + $0x340] sm:$0xff]
          %v419 = vld [vmem:[%s1 + $0x348] sm:$0xff]
          %v420 = vld [vmem:[%s1 + $0x350] sm:$0xff]
          %v421 = vld [vmem:[%s1 + $0x358] sm:$0xff]
          %v422 = vld [vmem:[%s1 + $0x360] sm:$0xff]
          %v423 = vld [vmem:[%s1 + $0x368] sm:$0xff]
          %v424 = vld [vmem:[%s1 + $0x370] sm:$0xff]
          %v425 = vld [vmem:[%s1 + $0x378] sm:$0xff]
          %v426 = vld [vmem:[%s1 + $0x380] sm:$0xff]
          %v427 = vld [vmem:[%s1 + $0x388] sm:$0xff]
          %v428 = vld [vmem:[%s1 + $0x390] sm:$0xff]
          %v429 = vld [vmem:[%s1 + $0x398] sm:$0xff]
          %v430 = vld [vmem:[%s1 + $0x3a0] sm:$0xff]
          %v431 = vld [vmem:[%s1 + $0x3a8] sm:$0xff]
          %v432 = vld [vmem:[%s1 + $0x3b0] sm:$0xff]
          %v433 = vld [vmem:[%s1 + $0x3b8] sm:$0xff]
          %v434 = vld [vmem:[%s1 + $0x3c0] sm:$0xff]
          %v435 = vld [vmem:[%s1 + $0x3c8] sm:$0xff]
          %v436 = vld [vmem:[%s1 + $0x3d0] sm:$0xff]
          %v437 = vld [vmem:[%s1 + $0x3d8] sm:$0xff]
          %v438 = vld [vmem:[%s1 + $0x3e0] sm:$0xff]
          %v439 = vld [vmem:[%s1 + $0x3e8] sm:$0xff]
          %v440 = vld [vmem:[%s1 + $0x3f0] sm:$0xff]
          %v441 = vld [vmem:[%s1 + $0x3f8] sm:$0xff]
          %442 = vmatprep.subr.mxu0 %v435
          %443 = vmatpush1.msra.mxu0 %v434
          %444 = vmatprep.subr.mxu0 %v427
          %445 = vmatpush1.msra.mxu0 %v426
          %446 = vmatprep.subr.mxu0 %v419
          %447 = vmatpush1.msra.mxu0 %v418
          %448 = vmatprep.subr.mxu0 %v411
          %449 = vmatpush1.msra.mxu0 %v410
          %450 = vmatprep.subr.mxu0 %v403
          %451 = vmatpush1.msra.mxu0 %v402
          %452 = vmatprep.subr.mxu0 %v395
          %453 = vmatpush1.msra.mxu0 %v394
          %454 = vmatprep.subr.mxu0 %v387
          %455 = vmatpush1.msra.mxu0 %v386
          %456 = vmatprep.subr.mxu0 %v379
          %457 = vmatpush1.msra.mxu0 %v378
          %458 = vmatprep.subr.mxu0 %v371
          %459 = vmatpush1.msra.mxu0 %v370
          %460 = vmatprep.subr.mxu0 %v363
          %461 = vmatpush1.msra.mxu0 %v362
          %462 = vmatprep.subr.mxu0 %v355
          %463 = vmatpush1.msra.mxu0 %v354
          %464 = vmatprep.subr.mxu0 %v347
          %465 = vmatpush1.msra.mxu0 %v346
          %466 = vmatprep.subr.mxu0 %v339
          %467 = vmatpush1.msra.mxu0 %v338
          %468 = vmatprep.subr.mxu0 %v331
          %469 = vmatpush1.msra.mxu0 %v330
          %470 = vmatprep.subr.mxu0 %v323
          %471 = vmatpush1.msra.mxu0 %v322
          %472 = vmatprep.subr.mxu0 %v315
          %473 = vmatpush1.msra.mxu0 %v314
          %474 = vmatprep.subr.mxu0 0.0
          %475 = vmatpush2.msra.mxu0 0.0
          %476 = vmatprep.subr.mxu0 0.0
          %477 = vmatpush2.msra.mxu0 0.0
          %478 = vmatprep.subr.mxu0 0.0
          %479 = vmatpush2.msra.mxu0 0.0
          %480 = vmatprep.subr.mxu0 0.0
          %481 = vmatpush2.msra.mxu0 0.0
          %482 = vmatprep.subr.mxu0 0.0
          %483 = vmatpush2.msra.mxu0 0.0
          %484 = vmatprep.subr.mxu0 0.0
          %485 = vmatpush2.msra.mxu0 0.0
          %486 = vmatprep.subr.mxu0 0.0
          %487 = vmatpush2.msra.mxu0 0.0
          %488 = vmatprep.subr.mxu0 0.0
          %489 = vmatpush2.msra.mxu0 0.0
          %490 = vmatprep.subr.mxu0 0.0
          %491 = vmatpush2.msra.mxu0 0.0
          %492 = vmatprep.subr.mxu0 0.0
          %493 = vmatpush2.msra.mxu0 0.0
          %494 = vmatprep.subr.mxu0 0.0
          %495 = vmatpush2.msra.mxu0 0.0
          %496 = vmatprep.subr.mxu0 0.0
          %497 = vmatpush2.msra.mxu0 0.0
          %498 = vmatprep.subr.mxu0 0.0
          %499 = vmatpush2.msra.mxu0 0.0
          %500 = vmatprep.subr.mxu0 0.0
          %501 = vmatpush2.msra.mxu0 0.0
          %502 = vmatprep.subr.mxu0 0.0
          %503 = vmatpush2.msra.mxu0 0.0
          %504 = vmatprep.subr.mxu0 0.0
          %505 = vmatpush2.msra.mxu0 0.0
          %506 = vmatprep.mubr.f32.mxu0 0.0
          %507 = vmatmul.mubr.f32.gmra.mxu0 %v313
          %v508 = vpop.f32.mrf.mxu0
          %v509 = vadd.f32 0.0, %v508
          %v510 = vpop.f32.mrf.mxu0
          %v511 = vadd.f32 0.0, %v510
          %512 = vdwg.mxu0
          %513 = vmatprep.subr.mxu0 %v437
          %514 = vmatpush1.msra.mxu0 %v436
          %515 = vmatprep.subr.mxu0 %v429
          %516 = vmatpush1.msra.mxu0 %v428
          %517 = vmatprep.subr.mxu0 %v421
          %518 = vmatpush1.msra.mxu0 %v420
          %519 = vmatprep.subr.mxu0 %v413
          %520 = vmatpush1.msra.mxu0 %v412
          %521 = vmatprep.subr.mxu0 %v405
          %522 = vmatpush1.msra.mxu0 %v404
          %523 = vmatprep.subr.mxu0 %v397
          %524 = vmatpush1.msra.mxu0 %v396
          %525 = vmatprep.subr.mxu0 %v389
          %526 = vmatpush1.msra.mxu0 %v388
          %527 = vmatprep.subr.mxu0 %v381
          %528 = vmatpush1.msra.mxu0 %v380
          %529 = vmatprep.subr.mxu0 %v373
          %530 = vmatpush1.msra.mxu0 %v372
          %531 = vmatprep.subr.mxu0 %v365
          %532 = vmatpush1.msra.mxu0 %v364
          %533 = vmatprep.subr.mxu0 %v357
          %534 = vmatpush1.msra.mxu0 %v356
          %535 = vmatprep.subr.mxu0 %v349
          %536 = vmatpush1.msra.mxu0 %v348
          %537 = vmatprep.subr.mxu0 %v341
          %538 = vmatpush1.msra.mxu0 %v340
          %539 = vmatprep.subr.mxu0 %v333
          %540 = vmatpush1.msra.mxu0 %v332
          %541 = vmatprep.subr.mxu0 %v325
          %542 = vmatpush1.msra.mxu0 %v324
          %543 = vmatprep.subr.mxu0 %v317
          %544 = vmatpush1.msra.mxu0 %v316
          %545 = vmatprep.subr.mxu0 0.0
          %546 = vmatpush2.msra.mxu0 0.0
          %547 = vmatprep.subr.mxu0 0.0
          %548 = vmatpush2.msra.mxu0 0.0
          %549 = vmatprep.subr.mxu0 0.0
          %550 = vmatpush2.msra.mxu0 0.0
          %551 = vmatprep.subr.mxu0 0.0
          %552 = vmatpush2.msra.mxu0 0.0
          %553 = vmatprep.subr.mxu0 0.0
          %554 = vmatpush2.msra.mxu0 0.0
          %555 = vmatprep.subr.mxu0 0.0
          %556 = vmatpush2.msra.mxu0 0.0
          %557 = vmatprep.subr.mxu0 0.0
          %558 = vmatpush2.msra.mxu0 0.0
          %559 = vmatprep.subr.mxu0 0.0
          %560 = vmatpush2.msra.mxu0 0.0
          %561 = vmatprep.subr.mxu0 0.0
          %562 = vmatpush2.msra.mxu0 0.0
          %563 = vmatprep.subr.mxu0 0.0
          %564 = vmatpush2.msra.mxu0 0.0
          %565 = vmatprep.subr.mxu0 0.0
          %566 = vmatpush2.msra.mxu0 0.0
          %567 = vmatprep.subr.mxu0 0.0
          %568 = vmatpush2.msra.mxu0 0.0
          %569 = vmatprep.subr.mxu0 0.0
          %570 = vmatpush2.msra.mxu0 0.0
          %571 = vmatprep.subr.mxu0 0.0
          %572 = vmatpush2.msra.mxu0 0.0
          %573 = vmatprep.subr.mxu0 0.0
          %574 = vmatpush2.msra.mxu0 0.0
          %575 = vmatprep.subr.mxu0 0.0
          %576 = vmatpush2.msra.mxu0 0.0
          %577 = vmatprep.mubr.f32.mxu0 0.0
          %578 = vmatmul.mubr.f32.gmra.mxu0 %v313
          %v579 = vpop.f32.mrf.mxu0
          %v580 = vadd.f32 0.0, %v579
          %v581 = vpop.f32.mrf.mxu0
          %v582 = vadd.f32 0.0, %v581
          %583 = vdwg.mxu0
          %584 = vmatprep.subr.mxu0 %v439
          %585 = vmatpush1.msra.mxu0 %v438
          %586 = vmatprep.subr.mxu0 %v431
          %587 = vmatpush1.msra.mxu0 %v430
          %588 = vmatprep.subr.mxu0 %v423
          %589 = vmatpush1.msra.mxu0 %v422
          %590 = vmatprep.subr.mxu0 %v415
          %591 = vmatpush1.msra.mxu0 %v414
          %592 = vmatprep.subr.mxu0 %v407
          %593 = vmatpush1.msra.mxu0 %v406
          %594 = vmatprep.subr.mxu0 %v399
          %595 = vmatpush1.msra.mxu0 %v398
          %596 = vmatprep.subr.mxu0 %v391
          %597 = vmatpush1.msra.mxu0 %v390
          %598 = vmatprep.subr.mxu0 %v383
          %599 = vmatpush1.msra.mxu0 %v382
          %600 = vmatprep.subr.mxu0 %v375
          %601 = vmatpush1.msra.mxu0 %v374
          %602 = vmatprep.subr.mxu0 %v367
          %603 = vmatpush1.msra.mxu0 %v366
          %604 = vmatprep.subr.mxu0 %v359
          %605 = vmatpush1.msra.mxu0 %v358
          %606 = vmatprep.subr.mxu0 %v351
          %607 = vmatpush1.msra.mxu0 %v350
          %608 = vmatprep.subr.mxu0 %v343
          %609 = vmatpush1.msra.mxu0 %v342
          %610 = vmatprep.subr.mxu0 %v335
          %611 = vmatpush1.msra.mxu0 %v334
          %612 = vmatprep.subr.mxu0 %v327
          %613 = vmatpush1.msra.mxu0 %v326
          %614 = vmatprep.subr.mxu0 %v319
          %615 = vmatpush1.msra.mxu0 %v318
          %616 = vmatprep.subr.mxu0 0.0
          %617 = vmatpush2.msra.mxu0 0.0
          %618 = vmatprep.subr.mxu0 0.0
          %619 = vmatpush2.msra.mxu0 0.0
          %620 = vmatprep.subr.mxu0 0.0
          %621 = vmatpush2.msra.mxu0 0.0
          %622 = vmatprep.subr.mxu0 0.0
          %623 = vmatpush2.msra.mxu0 0.0
          %624 = vmatprep.subr.mxu0 0.0
          %625 = vmatpush2.msra.mxu0 0.0
          %626 = vmatprep.subr.mxu0 0.0
          %627 = vmatpush2.msra.mxu0 0.0
          %628 = vmatprep.subr.mxu0 0.0
          %629 = vmatpush2.msra.mxu0 0.0
          %630 = vmatprep.subr.mxu0 0.0
          %631 = vmatpush2.msra.mxu0 0.0
          %632 = vmatprep.subr.mxu0 0.0
          %633 = vmatpush2.msra.mxu0 0.0
          %634 = vmatprep.subr.mxu0 0.0
          %635 = vmatpush2.msra.mxu0 0.0
          %636 = vmatprep.subr.mxu0 0.0
          %637 = vmatpush2.msra.mxu0 0.0
          %638 = vmatprep.subr.mxu0 0.0
          %639 = vmatpush2.msra.mxu0 0.0
          %640 = vmatprep.subr.mxu0 0.0
          %641 = vmatpush2.msra.mxu0 0.0
          %642 = vmatprep.subr.mxu0 0.0
          %643 = vmatpush2.msra.mxu0 0.0
          %644 = vmatprep.subr.mxu0 0.0
          %645 = vmatpush2.msra.mxu0 0.0
          %646 = vmatprep.subr.mxu0 0.0
          %647 = vmatpush2.msra.mxu0 0.0
          %648 = vmatprep.mubr.f32.mxu0 0.0
          %649 = vmatmul.mubr.f32.gmra.mxu0 %v313
          %v650 = vpop.f32.mrf.mxu0
          %v651 = vadd.f32 0.0, %v650
          %v652 = vpop.f32.mrf.mxu0
          %v653 = vadd.f32 0.0, %v652
          %654 = vdwg.mxu0
          %655 = vmatprep.subr.mxu0 %v441
          %656 = vmatpush1.msra.mxu0 %v440
          %657 = vmatprep.subr.mxu0 %v433
          %658 = vmatpush1.msra.mxu0 %v432
          %659 = vmatprep.subr.mxu0 %v425
          %660 = vmatpush1.msra.mxu0 %v424
          %661 = vmatprep.subr.mxu0 %v417
          %662 = vmatpush1.msra.mxu0 %v416
          %663 = vmatprep.subr.mxu0 %v409
          %664 = vmatpush1.msra.mxu0 %v408
          %665 = vmatprep.subr.mxu0 %v401
          %666 = vmatpush1.msra.mxu0 %v400
          %667 = vmatprep.subr.mxu0 %v393
          %668 = vmatpush1.msra.mxu0 %v392
          %669 = vmatprep.subr.mxu0 %v385
          %670 = vmatpush1.msra.mxu0 %v384
          %671 = vmatprep.subr.mxu0 %v377
          %672 = vmatpush1.msra.mxu0 %v376
          %673 = vmatprep.subr.mxu0 %v369
          %674 = vmatpush1.msra.mxu0 %v368
          %675 = vmatprep.subr.mxu0 %v361
          %676 = vmatpush1.msra.mxu0 %v360
          %677 = vmatprep.subr.mxu0 %v353
          %678 = vmatpush1.msra.mxu0 %v352
          %679 = vmatprep.subr.mxu0 %v345
          %680 = vmatpush1.msra.mxu0 %v344
          %681 = vmatprep.subr.mxu0 %v337
          %682 = vmatpush1.msra.mxu0 %v336
          %683 = vmatprep.subr.mxu0 %v329
          %684 = vmatpush1.msra.mxu0 %v328
          %685 = vmatprep.subr.mxu0 %v321
          %686 = vmatpush1.msra.mxu0 %v320
          %687 = vmatprep.subr.mxu0 0.0
          %688 = vmatpush2.msra.mxu0 0.0
          %689 = vmatprep.subr.mxu0 0.0
          %690 = vmatpush2.msra.mxu0 0.0
          %691 = vmatprep.subr.mxu0 0.0
          %692 = vmatpush2.msra.mxu0 0.0
          %693 = vmatprep.subr.mxu0 0.0
          %694 = vmatpush2.msra.mxu0 0.0
          %695 = vmatprep.subr.mxu0 0.0
          %696 = vmatpush2.msra.mxu0 0.0
          %697 = vmatprep.subr.mxu0 0.0
          %698 = vmatpush2.msra.mxu0 0.0
          %699 = vmatprep.subr.mxu0 0.0
          %700 = vmatpush2.msra.mxu0 0.0
          %701 = vmatprep.subr.mxu0 0.0
          %702 = vmatpush2.msra.mxu0 0.0
          %703 = vmatprep.subr.mxu0 0.0
          %704 = vmatpush2.msra.mxu0 0.0
          %705 = vmatprep.subr.mxu0 0.0
          %706 = vmatpush2.msra.mxu0 0.0
          %707 = vmatprep.subr.mxu0 0.0
          %708 = vmatpush2.msra.mxu0 0.0
          %709 = vmatprep.subr.mxu0 0.0
          %710 = vmatpush2.msra.mxu0 0.0
          %711 = vmatprep.subr.mxu0 0.0
          %712 = vmatpush2.msra.mxu0 0.0
          %713 = vmatprep.subr.mxu0 0.0
          %714 = vmatpush2.msra.mxu0 0.0
          %715 = vmatprep.subr.mxu0 0.0
          %716 = vmatpush2.msra.mxu0 0.0
          %717 = vmatprep.subr.mxu0 0.0
          %718 = vmatpush2.msra.mxu0 0.0
          %719 = vmatprep.mubr.f32.mxu0 0.0
          %720 = vmatmul.mubr.f32.gmra.mxu0 %v313
          %v721 = vpop.f32.mrf.mxu0
          %v722 = vadd.f32 0.0, %v721
          %v723 = vpop.f32.mrf.mxu0
          %v724 = vadd.f32 0.0, %v723
          %725 = vdwg.mxu0
          %s726 = smul.u32 %s29, 4
          %v735 = vcombine.low %v509, %v511
          %v736 = vcombine.low %v580, %v582
          %v737 = vcombine.low %v651, %v653
          %v738 = vcombine.low %v722, %v724
          %s743 = sshra.s32 %s726, 2
          %s744 = sand.u32 %s726, 3
          %s745 = smul.u32 %s743, 8
          %s746 = smul.addr %s745, 4
          %s747 = scalar_lea.vmem [#allocation2], %s746
          %748 = vst [vmem:[%s747] sm:$0xff] %v735
          %749 = vst [vmem:[%s747 + $0x8] sm:$0xff] %v736
          %750 = vst [vmem:[%s747 + $0x10] sm:$0xff] %v737
          %751 = vst [vmem:[%s747 + $0x18] sm:$0xff] %v738
          %v752 = vld [vmem:[#allocation3] ss:$2 sm:$0xff]
          %vm753 = vcmask 1043456
          %v754 = vsel %vm753, %v509, 0.0
          %v755 = vrot.slane %v754, 4
          %v756 = vadd.f32 %v754, %v755
          %v757 = vrot.slane %v756, 2
          %v758 = vadd.f32 %v756, %v757
          %v759 = vrot.slane %v758, 1
          %v760 = vadd.f32 %v758, %v759
          %v761 = vsel %vm753, %v511, 0.0
          %v762 = vrot.slane %v761, 4
          %v763 = vadd.f32 %v761, %v762
          %v764 = vrot.slane %v763, 2
          %v765 = vadd.f32 %v763, %v764
          %v766 = vrot.slane %v765, 1
          %v767 = vadd.f32 %v765, %v766
          %v768 = vsel %vm753, %v580, 0.0
          %v769 = vrot.slane %v768, 4
          %v770 = vadd.f32 %v768, %v769
          %v771 = vrot.slane %v770, 2
          %v772 = vadd.f32 %v770, %v771
          %v773 = vrot.slane %v772, 1
          %v774 = vadd.f32 %v772, %v773
          %v775 = vsel %vm753, %v582, 0.0
          %v776 = vrot.slane %v775, 4
          %v777 = vadd.f32 %v775, %v776
          %v778 = vrot.slane %v777, 2
          %v779 = vadd.f32 %v777, %v778
          %v780 = vrot.slane %v779, 1
          %v781 = vadd.f32 %v779, %v780
          %v782 = vsel %vm753, %v651, 0.0
          %v783 = vrot.slane %v782, 4
          %v784 = vadd.f32 %v782, %v783
          %v785 = vrot.slane %v784, 2
          %v786 = vadd.f32 %v784, %v785
          %v787 = vrot.slane %v786, 1
          %v788 = vadd.f32 %v786, %v787
          %v789 = vsel %vm753, %v653, 0.0
          %v790 = vrot.slane %v789, 4
          %v791 = vadd.f32 %v789, %v790
          %v792 = vrot.slane %v791, 2
          %v793 = vadd.f32 %v791, %v792
          %v794 = vrot.slane %v793, 1
          %v795 = vadd.f32 %v793, %v794
          %v796 = vsel %vm753, %v722, 0.0
          %v797 = vrot.slane %v796, 4
          %v798 = vadd.f32 %v796, %v797
          %v799 = vrot.slane %v798, 2
          %v800 = vadd.f32 %v798, %v799
          %v801 = vrot.slane %v800, 1
          %v802 = vadd.f32 %v800, %v801
          %v803 = vsel %vm753, %v724, 0.0
          %v804 = vrot.slane %v803, 4
          %v805 = vadd.f32 %v803, %v804
          %v806 = vrot.slane %v805, 2
          %v807 = vadd.f32 %v805, %v806
          %v808 = vrot.slane %v807, 1
          %v809 = vadd.f32 %v807, %v808
          %v818 = vcombine.low %v760, %v767
          %v819 = vcombine.low %v774, %v781
          %v820 = vcombine.low %v788, %v795
          %v821 = vcombine.low %v802, %v809
          %v823 = vunpack.c.l.s4 1966171168
          %v824 = vunpack.c.0.s8 %v823
          %v825 = vlaneseq
          %v826 = vshrl.u32 %v825, 7
          %v827 = vsub.s32 %v824, %v826
          %v828 = vrot.slane %v818, %v827
          %v830 = vunpack.c.l.s4 1966171168
          %v831 = vunpack.c.0.s8 %v830
          %v832 = vlaneseq
          %v833 = vshrl.u32 %v832, 7
          %v834 = vsub.s32 %v831, %v833
          %v835 = vrot.slane %v819, %v834
          %v837 = vunpack.c.l.s4 1966171168
          %v838 = vunpack.c.0.s8 %v837
          %v839 = vlaneseq
          %v840 = vshrl.u32 %v839, 7
          %v841 = vsub.s32 %v838, %v840
          %v842 = vrot.slane %v820, %v841
          %v844 = vunpack.c.l.s4 1966171168
          %v845 = vunpack.c.0.s8 %v844
          %v846 = vlaneseq
          %v847 = vshrl.u32 %v846, 7
          %v848 = vsub.s32 %v845, %v847
          %v849 = vrot.slane %v821, %v848
          %v850 = vcombine.low %v828, %v835
          %v851 = vcombine.low %v842, %v849
          %v853 = vunpack.c.l.s4 1966171168
          %v854 = vunpack.c.0.s8 %v853
          %v855 = vlaneseq
          %v856 = vshrl.u32 %v855, 7
          %v857 = vsub.s32 %v854, %v856
          %v858 = vrot.slane %v850, %v857
          %v860 = vunpack.c.l.s4 1966171168
          %v861 = vunpack.c.0.s8 %v860
          %v862 = vlaneseq
          %v863 = vshrl.u32 %v862, 7
          %v864 = vsub.s32 %v861, %v863
          %v865 = vrot.slane %v851, %v864
          %v866 = vcombine.low %v858, %v865
          %v868 = vadd.f32 %v752, %v866
          %869 = vst [vmem:[#allocation3] ss:$2 sm:$0xff] %v868
          %s870 = scalar_lea.vmem [#allocation3], 1
          %v871 = vld [vmem:[%s870] ss:$2 sm:$0xff]
          %v872 = vmul.f32 %v509, %v509
          %v873 = vmul.f32 %v511, %v511
          %v874 = vmul.f32 %v580, %v580
          %v875 = vmul.f32 %v582, %v582
          %v876 = vmul.f32 %v651, %v651
          %v877 = vmul.f32 %v653, %v653
          %v878 = vmul.f32 %v722, %v722
          %v879 = vmul.f32 %v724, %v724
          %v880 = vsel %vm753, %v872, 0.0
          %v881 = vrot.slane %v880, 4
          %v882 = vadd.f32 %v880, %v881
          %v883 = vrot.slane %v882, 2
          %v884 = vadd.f32 %v882, %v883
          %v885 = vrot.slane %v884, 1
          %v886 = vadd.f32 %v884, %v885
          %v887 = vsel %vm753, %v873, 0.0
          %v888 = vrot.slane %v887, 4
          %v889 = vadd.f32 %v887, %v888
          %v890 = vrot.slane %v889, 2
          %v891 = vadd.f32 %v889, %v890
          %v892 = vrot.slane %v891, 1
          %v893 = vadd.f32 %v891, %v892
          %v894 = vsel %vm753, %v874, 0.0
          %v895 = vrot.slane %v894, 4
          %v896 = vadd.f32 %v894, %v895
          %v897 = vrot.slane %v896, 2
          %v898 = vadd.f32 %v896, %v897
          %v899 = vrot.slane %v898, 1
          %v900 = vadd.f32 %v898, %v899
          %v901 = vsel %vm753, %v875, 0.0
          %v902 = vrot.slane %v901, 4
          %v903 = vadd.f32 %v901, %v902
          %v904 = vrot.slane %v903, 2
          %v905 = vadd.f32 %v903, %v904
          %v906 = vrot.slane %v905, 1
          %v907 = vadd.f32 %v905, %v906
          %v908 = vsel %vm753, %v876, 0.0
          %v909 = vrot.slane %v908, 4
          %v910 = vadd.f32 %v908, %v909
          %v911 = vrot.slane %v910, 2
          %v912 = vadd.f32 %v910, %v911
          %v913 = vrot.slane %v912, 1
          %v914 = vadd.f32 %v912, %v913
          %v915 = vsel %vm753, %v877, 0.0
          %v916 = vrot.slane %v915, 4
          %v917 = vadd.f32 %v915, %v916
          %v918 = vrot.slane %v917, 2
          %v919 = vadd.f32 %v917, %v918
          %v920 = vrot.slane %v919, 1
          %v921 = vadd.f32 %v919, %v920
          %v922 = vsel %vm753, %v878, 0.0
          %v923 = vrot.slane %v922, 4
          %v924 = vadd.f32 %v922, %v923
          %v925 = vrot.slane %v924, 2
          %v926 = vadd.f32 %v924, %v925
          %v927 = vrot.slane %v926, 1
          %v928 = vadd.f32 %v926, %v927
          %v929 = vsel %vm753, %v879, 0.0
          %v930 = vrot.slane %v929, 4
          %v931 = vadd.f32 %v929, %v930
          %v932 = vrot.slane %v931, 2
          %v933 = vadd.f32 %v931, %v932
          %v934 = vrot.slane %v933, 1
          %v935 = vadd.f32 %v933, %v934
          %v944 = vcombine.low %v886, %v893
          %v945 = vcombine.low %v900, %v907
          %v946 = vcombine.low %v914, %v921
          %v947 = vcombine.low %v928, %v935
          %v949 = vunpack.c.l.s4 1966171168
          %v950 = vunpack.c.0.s8 %v949
          %v951 = vlaneseq
          %v952 = vshrl.u32 %v951, 7
          %v953 = vsub.s32 %v950, %v952
          %v954 = vrot.slane %v944, %v953
          %v956 = vunpack.c.l.s4 1966171168
          %v957 = vunpack.c.0.s8 %v956
          %v958 = vlaneseq
          %v959 = vshrl.u32 %v958, 7
          %v960 = vsub.s32 %v957, %v959
          %v961 = vrot.slane %v945, %v960
          %v963 = vunpack.c.l.s4 1966171168
          %v964 = vunpack.c.0.s8 %v963
          %v965 = vlaneseq
          %v966 = vshrl.u32 %v965, 7
          %v967 = vsub.s32 %v964, %v966
          %v968 = vrot.slane %v946, %v967
          %v970 = vunpack.c.l.s4 1966171168
          %v971 = vunpack.c.0.s8 %v970
          %v972 = vlaneseq
          %v973 = vshrl.u32 %v972, 7
          %v974 = vsub.s32 %v971, %v973
          %v975 = vrot.slane %v947, %v974
          %v976 = vcombine.low %v954, %v961
          %v977 = vcombine.low %v968, %v975
          %v979 = vunpack.c.l.s4 1966171168
          %v980 = vunpack.c.0.s8 %v979
          %v981 = vlaneseq
          %v982 = vshrl.u32 %v981, 7
          %v983 = vsub.s32 %v980, %v982
          %v984 = vrot.slane %v976, %v983
          %v986 = vunpack.c.l.s4 1966171168
          %v987 = vunpack.c.0.s8 %v986
          %v988 = vlaneseq
          %v989 = vshrl.u32 %v988, 7
          %v990 = vsub.s32 %v987, %v989
          %v991 = vrot.slane %v977, %v990
          %v992 = vcombine.low %v984, %v991
          %v994 = vadd.f32 %v871, %v992
          %995 = vst [vmem:[%s870] ss:$2 sm:$0xff] %v994
        $region56: #{tpu_custom_call.1} parent=43 // pred_fallthru
          _
        %p996 = scmp.eq.s32.totalorder %s28, 1
        // Predicated region
        $region61: #{tpu_custom_call.1} parent=43 // pred_check
          %p997 = pneg %p996
        $region62: #{tpu_custom_call.1} parent=43 // pred_check_branch
          %999 = sbr.rel (%p997) target = $region64
        $region63: #{tpu_custom_call.1} parent=43 // pred_region
          %p1000 = scmp.eq.s32.totalorder %s29, 0
          // Predicated region
          $region65: #{tpu_custom_call.1} parent=63 // pred_check
            %p1001 = pneg %p1000
          $region66: #{tpu_custom_call.1} parent=63 // pred_check_branch
            %1003 = sbr.rel (%p1001) target = $region68
          $region67: #{tpu_custom_call.1} parent=63 // pred_region
            %v1004 = vld [vmem:[#allocation3] ss:$2 sm:$0xff]
            %v1005 = vld [vmem:[%s2] sm:$0xff]
            %v1006 = vld [vmem:[%s2 + $0x8] sm:$0xff]
            %v1007 = vld [vmem:[%s2 + $0x10] sm:$0xff]
            %v1008 = vld [vmem:[%s2 + $0x18] sm:$0xff]
            %v1009 = vld [vmem:[%s2 + $0x20] sm:$0xff]
            %v1010 = vld [vmem:[%s2 + $0x28] sm:$0xff]
            %v1011 = vld [vmem:[%s2 + $0x30] sm:$0xff]
            %v1012 = vld [vmem:[%s2 + $0x38] sm:$0xff]
            %v1013 = vld [vmem:[%s2 + $0x40] sm:$0xff]
            %v1014 = vld [vmem:[%s2 + $0x48] sm:$0xff]
            %v1015 = vld [vmem:[%s2 + $0x50] sm:$0xff]
            %v1016 = vld [vmem:[%s2 + $0x58] sm:$0xff]
            %v1017 = vld [vmem:[%s2 + $0x60] sm:$0xff]
            %v1018 = vld [vmem:[%s2 + $0x68] sm:$0xff]
            %v1019 = vld [vmem:[%s2 + $0x70] sm:$0xff]
            %v1020 = vld [vmem:[%s2 + $0x78] sm:$0xff]
            %v1021 = vld [vmem:[%s2 + $0x80] sm:$0xff]
            %v1022 = vld [vmem:[%s2 + $0x88] sm:$0xff]
            %v1023 = vld [vmem:[%s2 + $0x90] sm:$0xff]
            %v1024 = vld [vmem:[%s2 + $0x98] sm:$0xff]
            %v1025 = vld [vmem:[%s2 + $0xa0] sm:$0xff]
            %v1026 = vld [vmem:[%s2 + $0xa8] sm:$0xff]
            %v1027 = vld [vmem:[%s2 + $0xb0] sm:$0xff]
            %v1028 = vld [vmem:[%s2 + $0xb8] sm:$0xff]
            %v1029 = vld [vmem:[%s2 + $0xc0] sm:$0xff]
            %v1030 = vld [vmem:[%s2 + $0xc8] sm:$0xff]
            %v1031 = vld [vmem:[%s2 + $0xd0] sm:$0xff]
            %v1032 = vld [vmem:[%s2 + $0xd8] sm:$0xff]
            %v1033 = vld [vmem:[%s2 + $0xe0] sm:$0xff]
            %v1034 = vld [vmem:[%s2 + $0xe8] sm:$0xff]
            %v1035 = vld [vmem:[%s2 + $0xf0] sm:$0xff]
            %v1036 = vld [vmem:[%s2 + $0xf8] sm:$0xff]
            %v1037 = vld [vmem:[%s2 + $0x100] sm:$0xff]
            %v1038 = vld [vmem:[%s2 + $0x108] sm:$0xff]
            %v1039 = vld [vmem:[%s2 + $0x110] sm:$0xff]
            %v1040 = vld [vmem:[%s2 + $0x118] sm:$0xff]
            %v1041 = vld [vmem:[%s2 + $0x120] sm:$0xff]
            %v1042 = vld [vmem:[%s2 + $0x128] sm:$0xff]
            %v1043 = vld [vmem:[%s2 + $0x130] sm:$0xff]
            %v1044 = vld [vmem:[%s2 + $0x138] sm:$0xff]
            %v1045 = vld [vmem:[%s2 + $0x140] sm:$0xff]
            %v1046 = vld [vmem:[%s2 + $0x148] sm:$0xff]
            %v1047 = vld [vmem:[%s2 + $0x150] sm:$0xff]
            %v1048 = vld [vmem:[%s2 + $0x158] sm:$0xff]
            %v1049 = vld [vmem:[%s2 + $0x160] sm:$0xff]
            %v1050 = vld [vmem:[%s2 + $0x168] sm:$0xff]
            %v1051 = vld [vmem:[%s2 + $0x170] sm:$0xff]
            %v1052 = vld [vmem:[%s2 + $0x178] sm:$0xff]
            %v1053 = vld [vmem:[%s2 + $0x180] sm:$0xff]
            %v1054 = vld [vmem:[%s2 + $0x188] sm:$0xff]
            %v1055 = vld [vmem:[%s2 + $0x190] sm:$0xff]
            %v1056 = vld [vmem:[%s2 + $0x198] sm:$0xff]
            %v1057 = vld [vmem:[%s2 + $0x1a0] sm:$0xff]
            %v1058 = vld [vmem:[%s2 + $0x1a8] sm:$0xff]
            %v1059 = vld [vmem:[%s2 + $0x1b0] sm:$0xff]
            %v1060 = vld [vmem:[%s2 + $0x1b8] sm:$0xff]
            %v1061 = vld [vmem:[%s2 + $0x1c0] sm:$0xff]
            %v1062 = vld [vmem:[%s2 + $0x1c8] sm:$0xff]
            %v1063 = vld [vmem:[%s2 + $0x1d0] sm:$0xff]
            %v1064 = vld [vmem:[%s2 + $0x1d8] sm:$0xff]
            %v1065 = vld [vmem:[%s2 + $0x1e0] sm:$0xff]
            %v1066 = vld [vmem:[%s2 + $0x1e8] sm:$0xff]
            %v1067 = vld [vmem:[%s2 + $0x1f0] sm:$0xff]
            %v1068 = vld [vmem:[%s2 + $0x1f8] sm:$0xff]
            %v1069 = vld [vmem:[%s2 + $0x200] sm:$0xff]
            %v1070 = vld [vmem:[%s2 + $0x208] sm:$0xff]
            %v1071 = vld [vmem:[%s2 + $0x210] sm:$0xff]
            %v1072 = vld [vmem:[%s2 + $0x218] sm:$0xff]
            %v1073 = vld [vmem:[%s2 + $0x220] sm:$0xff]
            %v1074 = vld [vmem:[%s2 + $0x228] sm:$0xff]
            %v1075 = vld [vmem:[%s2 + $0x230] sm:$0xff]
            %v1076 = vld [vmem:[%s2 + $0x238] sm:$0xff]
            %v1077 = vld [vmem:[%s2 + $0x240] sm:$0xff]
            %v1078 = vld [vmem:[%s2 + $0x248] sm:$0xff]
            %v1079 = vld [vmem:[%s2 + $0x250] sm:$0xff]
            %v1080 = vld [vmem:[%s2 + $0x258] sm:$0xff]
            %v1081 = vld [vmem:[%s2 + $0x260] sm:$0xff]
            %v1082 = vld [vmem:[%s2 + $0x268] sm:$0xff]
            %v1083 = vld [vmem:[%s2 + $0x270] sm:$0xff]
            %v1084 = vld [vmem:[%s2 + $0x278] sm:$0xff]
            %v1085 = vld [vmem:[%s2 + $0x280] sm:$0xff]
            %v1086 = vld [vmem:[%s2 + $0x288] sm:$0xff]
            %v1087 = vld [vmem:[%s2 + $0x290] sm:$0xff]
            %v1088 = vld [vmem:[%s2 + $0x298] sm:$0xff]
            %v1089 = vld [vmem:[%s2 + $0x2a0] sm:$0xff]
            %v1090 = vld [vmem:[%s2 + $0x2a8] sm:$0xff]
            %v1091 = vld [vmem:[%s2 + $0x2b0] sm:$0xff]
            %v1092 = vld [vmem:[%s2 + $0x2b8] sm:$0xff]
            %v1093 = vld [vmem:[%s2 + $0x2c0] sm:$0xff]
            %v1094 = vld [vmem:[%s2 + $0x2c8] sm:$0xff]
            %v1095 = vld [vmem:[%s2 + $0x2d0] sm:$0xff]
            %v1096 = vld [vmem:[%s2 + $0x2d8] sm:$0xff]
            %v1097 = vld [vmem:[%s2 + $0x2e0] sm:$0xff]
            %v1098 = vld [vmem:[%s2 + $0x2e8] sm:$0xff]
            %v1099 = vld [vmem:[%s2 + $0x2f0] sm:$0xff]
            %v1100 = vld [vmem:[%s2 + $0x2f8] sm:$0xff]
            %v1101 = vld [vmem:[%s2 + $0x300] sm:$0xff]
            %v1102 = vld [vmem:[%s2 + $0x308] sm:$0xff]
            %v1103 = vld [vmem:[%s2 + $0x310] sm:$0xff]
            %v1104 = vld [vmem:[%s2 + $0x318] sm:$0xff]
            %v1105 = vld [vmem:[%s2 + $0x320] sm:$0xff]
            %v1106 = vld [vmem:[%s2 + $0x328] sm:$0xff]
            %v1107 = vld [vmem:[%s2 + $0x330] sm:$0xff]
            %v1108 = vld [vmem:[%s2 + $0x338] sm:$0xff]
            %v1109 = vld [vmem:[%s2 + $0x340] sm:$0xff]
            %v1110 = vld [vmem:[%s2 + $0x348] sm:$0xff]
            %v1111 = vld [vmem:[%s2 + $0x350] sm:$0xff]
            %v1112 = vld [vmem:[%s2 + $0x358] sm:$0xff]
            %v1113 = vld [vmem:[%s2 + $0x360] sm:$0xff]
            %v1114 = vld [vmem:[%s2 + $0x368] sm:$0xff]
            %v1115 = vld [vmem:[%s2 + $0x370] sm:$0xff]
            %v1116 = vld [vmem:[%s2 + $0x378] sm:$0xff]
            %v1117 = vld [vmem:[%s2 + $0x380] sm:$0xff]
            %v1118 = vld [vmem:[%s2 + $0x388] sm:$0xff]
            %v1119 = vld [vmem:[%s2 + $0x390] sm:$0xff]
            %v1120 = vld [vmem:[%s2 + $0x398] sm:$0xff]
            %v1121 = vld [vmem:[%s2 + $0x3a0] sm:$0xff]
            %v1122 = vld [vmem:[%s2 + $0x3a8] sm:$0xff]
            %v1123 = vld [vmem:[%s2 + $0x3b0] sm:$0xff]
            %v1124 = vld [vmem:[%s2 + $0x3b8] sm:$0xff]
            %v1125 = vld [vmem:[%s2 + $0x3c0] sm:$0xff]
            %v1126 = vld [vmem:[%s2 + $0x3c8] sm:$0xff]
            %v1127 = vld [vmem:[%s2 + $0x3d0] sm:$0xff]
            %v1128 = vld [vmem:[%s2 + $0x3d8] sm:$0xff]
            %v1129 = vld [vmem:[%s2 + $0x3e0] sm:$0xff]
            %v1130 = vld [vmem:[%s2 + $0x3e8] sm:$0xff]
            %v1131 = vld [vmem:[%s2 + $0x3f0] sm:$0xff]
            %v1132 = vld [vmem:[%s2 + $0x3f8] sm:$0xff]
            %v1134 = vlaneseq
            %v1135 = vshrl.u32 %v1134, 7
            %v1136 = vsub.s32 0, %v1135
            %v1137 = vrot.slane %v1004, %v1136
            %v1138 = vlaneseq
            %v1139 = vshrl.u32 %v1138, 7
            %v1140 = vsub.s32 1, %v1139
            %v1141 = vrot.slane %v1004, %v1140
            %v1142 = vlaneseq
            %v1143 = vshrl.u32 %v1142, 7
            %v1144 = vsub.s32 2, %v1143
            %v1145 = vrot.slane %v1004, %v1144
            %v1146 = vlaneseq
            %v1147 = vshrl.u32 %v1146, 7
            %v1148 = vsub.s32 3, %v1147
            %v1149 = vrot.slane %v1004, %v1148
            %v1150 = vlaneseq
            %v1151 = vshrl.u32 %v1150, 7
            %v1152 = vsub.s32 4, %v1151
            %v1153 = vrot.slane %v1004, %v1152
            %v1154 = vlaneseq
            %v1155 = vshrl.u32 %v1154, 7
            %v1156 = vsub.s32 5, %v1155
            %v1157 = vrot.slane %v1004, %v1156
            %v1158 = vlaneseq
            %v1159 = vshrl.u32 %v1158, 7
            %v1160 = vsub.s32 6, %v1159
            %v1161 = vrot.slane %v1004, %v1160
            %v1162 = vlaneseq
            %v1163 = vshrl.u32 %v1162, 7
            %v1164 = vsub.s32 7, %v1163
            %v1165 = vrot.slane %v1004, %v1164
            %1174 = vmatprep.subr.mxu0 0.0
            %1175 = vmatpush1.msra.mxu0 %v1020
            %1176 = vmatprep.subr.mxu0 0.0
            %1177 = vmatpush1.msra.mxu0 %v1019
            %1178 = vmatprep.subr.mxu0 0.0
            %1179 = vmatpush1.msra.mxu0 %v1018
            %1180 = vmatprep.subr.mxu0 0.0
            %1181 = vmatpush1.msra.mxu0 %v1017
            %1182 = vmatprep.subr.mxu0 0.0
            %1183 = vmatpush1.msra.mxu0 %v1016
            %1184 = vmatprep.subr.mxu0 0.0
            %1185 = vmatpush1.msra.mxu0 %v1015
            %1186 = vmatprep.subr.mxu0 0.0
            %1187 = vmatpush1.msra.mxu0 %v1014
            %1188 = vmatprep.subr.mxu0 0.0
            %1189 = vmatpush1.msra.mxu0 %v1013
            %1190 = vmatprep.subr.mxu0 0.0
            %1191 = vmatpush1.msra.mxu0 %v1012
            %1192 = vmatprep.subr.mxu0 0.0
            %1193 = vmatpush1.msra.mxu0 %v1011
            %1194 = vmatprep.subr.mxu0 0.0
            %1195 = vmatpush1.msra.mxu0 %v1010
            %1196 = vmatprep.subr.mxu0 0.0
            %1197 = vmatpush1.msra.mxu0 %v1009
            %1198 = vmatprep.subr.mxu0 0.0
            %1199 = vmatpush1.msra.mxu0 %v1008
            %1200 = vmatprep.subr.mxu0 0.0
            %1201 = vmatpush1.msra.mxu0 %v1007
            %1202 = vmatprep.subr.mxu0 0.0
            %1203 = vmatpush1.msra.mxu0 %v1006
            %1204 = vmatprep.subr.mxu0 0.0
            %1205 = vmatpush1.msra.mxu0 %v1005
            %1206 = vmatprep.subr.mxu0 0.0
            %1207 = vmatpush2.msra.mxu0 %v1036
            %1208 = vmatprep.subr.mxu0 0.0
            %1209 = vmatpush2.msra.mxu0 %v1035
            %1210 = vmatprep.subr.mxu0 0.0
            %1211 = vmatpush2.msra.mxu0 %v1034
            %1212 = vmatprep.subr.mxu0 0.0
            %1213 = vmatpush2.msra.mxu0 %v1033
            %1214 = vmatprep.subr.mxu0 0.0
            %1215 = vmatpush2.msra.mxu0 %v1032
            %1216 = vmatprep.subr.mxu0 0.0
            %1217 = vmatpush2.msra.mxu0 %v1031
            %1218 = vmatprep.subr.mxu0 0.0
            %1219 = vmatpush2.msra.mxu0 %v1030
            %1220 = vmatprep.subr.mxu0 0.0
            %1221 = vmatpush2.msra.mxu0 %v1029
            %1222 = vmatprep.subr.mxu0 0.0
            %1223 = vmatpush2.msra.mxu0 %v1028
            %1224 = vmatprep.subr.mxu0 0.0
            %1225 = vmatpush2.msra.mxu0 %v1027
            %1226 = vmatprep.subr.mxu0 0.0
            %1227 = vmatpush2.msra.mxu0 %v1026
            %1228 = vmatprep.subr.mxu0 0.0
            %1229 = vmatpush2.msra.mxu0 %v1025
            %1230 = vmatprep.subr.mxu0 0.0
            %1231 = vmatpush2.msra.mxu0 %v1024
            %1232 = vmatprep.subr.mxu0 0.0
            %1233 = vmatpush2.msra.mxu0 %v1023
            %1234 = vmatprep.subr.mxu0 0.0
            %1235 = vmatpush2.msra.mxu0 %v1022
            %1236 = vmatprep.subr.mxu0 0.0
            %1237 = vmatpush2.msra.mxu0 %v1021
            %1238 = vmatprep.mubr.f32.mxu0 %v1141
            %1239 = vmatmul.mubr.f32.gmra.mxu0 %v1137
            %v1240 = vpop.f32.mrf.mxu0
            %v1241 = vadd.f32 0.0, %v1240
            %v1242 = vpop.f32.mrf.mxu0
            %1243 = vdwg.mxu0
            %1244 = vmatprep.subr.mxu0 0.0
            %1245 = vmatpush1.msra.mxu0 %v1052
            %1246 = vmatprep.subr.mxu0 0.0
            %1247 = vmatpush1.msra.mxu0 %v1051
            %1248 = vmatprep.subr.mxu0 0.0
            %1249 = vmatpush1.msra.mxu0 %v1050
            %1250 = vmatprep.subr.mxu0 0.0
            %1251 = vmatpush1.msra.mxu0 %v1049
            %1252 = vmatprep.subr.mxu0 0.0
            %1253 = vmatpush1.msra.mxu0 %v1048
            %1254 = vmatprep.subr.mxu0 0.0
            %1255 = vmatpush1.msra.mxu0 %v1047
            %1256 = vmatprep.subr.mxu0 0.0
            %1257 = vmatpush1.msra.mxu0 %v1046
            %1258 = vmatprep.subr.mxu0 0.0
            %1259 = vmatpush1.msra.mxu0 %v1045
            %1260 = vmatprep.subr.mxu0 0.0
            %1261 = vmatpush1.msra.mxu0 %v1044
            %1262 = vmatprep.subr.mxu0 0.0
            %1263 = vmatpush1.msra.mxu0 %v1043
            %1264 = vmatprep.subr.mxu0 0.0
            %1265 = vmatpush1.msra.mxu0 %v1042
            %1266 = vmatprep.subr.mxu0 0.0
            %1267 = vmatpush1.msra.mxu0 %v1041
            %1268 = vmatprep.subr.mxu0 0.0
            %1269 = vmatpush1.msra.mxu0 %v1040
            %1270 = vmatprep.subr.mxu0 0.0
            %1271 = vmatpush1.msra.mxu0 %v1039
            %1272 = vmatprep.subr.mxu0 0.0
            %1273 = vmatpush1.msra.mxu0 %v1038
            %1274 = vmatprep.subr.mxu0 0.0
            %1275 = vmatpush1.msra.mxu0 %v1037
            %1276 = vmatprep.subr.mxu0 0.0
            %1277 = vmatpush2.msra.mxu0 %v1068
            %1278 = vmatprep.subr.mxu0 0.0
            %1279 = vmatpush2.msra.mxu0 %v1067
            %1280 = vmatprep.subr.mxu0 0.0
            %1281 = vmatpush2.msra.mxu0 %v1066
            %1282 = vmatprep.subr.mxu0 0.0
            %1283 = vmatpush2.msra.mxu0 %v1065
            %1284 = vmatprep.subr.mxu0 0.0
            %1285 = vmatpush2.msra.mxu0 %v1064
            %1286 = vmatprep.subr.mxu0 0.0
            %1287 = vmatpush2.msra.mxu0 %v1063
            %1288 = vmatprep.subr.mxu0 0.0
            %1289 = vmatpush2.msra.mxu0 %v1062
            %1290 = vmatprep.subr.mxu0 0.0
            %1291 = vmatpush2.msra.mxu0 %v1061
            %1292 = vmatprep.subr.mxu0 0.0
            %1293 = vmatpush2.msra.mxu0 %v1060
            %1294 = vmatprep.subr.mxu0 0.0
            %1295 = vmatpush2.msra.mxu0 %v1059
            %1296 = vmatprep.subr.mxu0 0.0
            %1297 = vmatpush2.msra.mxu0 %v1058
            %1298 = vmatprep.subr.mxu0 0.0
            %1299 = vmatpush2.msra.mxu0 %v1057
            %1300 = vmatprep.subr.mxu0 0.0
            %1301 = vmatpush2.msra.mxu0 %v1056
            %1302 = vmatprep.subr.mxu0 0.0
            %1303 = vmatpush2.msra.mxu0 %v1055
            %1304 = vmatprep.subr.mxu0 0.0
            %1305 = vmatpush2.msra.mxu0 %v1054
            %1306 = vmatprep.subr.mxu0 0.0
            %1307 = vmatpush2.msra.mxu0 %v1053
            %1308 = vmatprep.mubr.f32.mxu0 %v1149
            %1309 = vmatmul.mubr.f32.gmra.mxu0 %v1145
            %v1310 = vpop.f32.mrf.mxu0
            %v1311 = vadd.f32 %v1241, %v1310
            %v1312 = vpop.f32.mrf.mxu0
            %1313 = vdwg.mxu0
            %1314 = vmatprep.subr.mxu0 0.0
            %1315 = vmatpush1.msra.mxu0 %v1084
            %1316 = vmatprep.subr.mxu0 0.0
            %1317 = vmatpush1.msra.mxu0 %v1083
            %1318 = vmatprep.subr.mxu0 0.0
            %1319 = vmatpush1.msra.mxu0 %v1082
            %1320 = vmatprep.subr.mxu0 0.0
            %1321 = vmatpush1.msra.mxu0 %v1081
            %1322 = vmatprep.subr.mxu0 0.0
            %1323 = vmatpush1.msra.mxu0 %v1080
            %1324 = vmatprep.subr.mxu0 0.0
            %1325 = vmatpush1.msra.mxu0 %v1079
            %1326 = vmatprep.subr.mxu0 0.0
            %1327 = vmatpush1.msra.mxu0 %v1078
            %1328 = vmatprep.subr.mxu0 0.0
            %1329 = vmatpush1.msra.mxu0 %v1077
            %1330 = vmatprep.subr.mxu0 0.0
            %1331 = vmatpush1.msra.mxu0 %v1076
            %1332 = vmatprep.subr.mxu0 0.0
            %1333 = vmatpush1.msra.mxu0 %v1075
            %1334 = vmatprep.subr.mxu0 0.0
            %1335 = vmatpush1.msra.mxu0 %v1074
            %1336 = vmatprep.subr.mxu0 0.0
            %1337 = vmatpush1.msra.mxu0 %v1073
            %1338 = vmatprep.subr.mxu0 0.0
            %1339 = vmatpush1.msra.mxu0 %v1072
            %1340 = vmatprep.subr.mxu0 0.0
            %1341 = vmatpush1.msra.mxu0 %v1071
            %1342 = vmatprep.subr.mxu0 0.0
            %1343 = vmatpush1.msra.mxu0 %v1070
            %1344 = vmatprep.subr.mxu0 0.0
            %1345 = vmatpush1.msra.mxu0 %v1069
            %1346 = vmatprep.subr.mxu0 0.0
            %1347 = vmatpush2.msra.mxu0 %v1100
            %1348 = vmatprep.subr.mxu0 0.0
            %1349 = vmatpush2.msra.mxu0 %v1099
            %1350 = vmatprep.subr.mxu0 0.0
            %1351 = vmatpush2.msra.mxu0 %v1098
            %1352 = vmatprep.subr.mxu0 0.0
            %1353 = vmatpush2.msra.mxu0 %v1097
            %1354 = vmatprep.subr.mxu0 0.0
            %1355 = vmatpush2.msra.mxu0 %v1096
            %1356 = vmatprep.subr.mxu0 0.0
            %1357 = vmatpush2.msra.mxu0 %v1095
            %1358 = vmatprep.subr.mxu0 0.0
            %1359 = vmatpush2.msra.mxu0 %v1094
            %1360 = vmatprep.subr.mxu0 0.0
            %1361 = vmatpush2.msra.mxu0 %v1093
            %1362 = vmatprep.subr.mxu0 0.0
            %1363 = vmatpush2.msra.mxu0 %v1092
            %1364 = vmatprep.subr.mxu0 0.0
            %1365 = vmatpush2.msra.mxu0 %v1091
            %1366 = vmatprep.subr.mxu0 0.0
            %1367 = vmatpush2.msra.mxu0 %v1090
            %1368 = vmatprep.subr.mxu0 0.0
            %1369 = vmatpush2.msra.mxu0 %v1089
            %1370 = vmatprep.subr.mxu0 0.0
            %1371 = vmatpush2.msra.mxu0 %v1088
            %1372 = vmatprep.subr.mxu0 0.0
            %1373 = vmatpush2.msra.mxu0 %v1087
            %1374 = vmatprep.subr.mxu0 0.0
            %1375 = vmatpush2.msra.mxu0 %v1086
            %1376 = vmatprep.subr.mxu0 0.0
            %1377 = vmatpush2.msra.mxu0 %v1085
            %1378 = vmatprep.mubr.f32.mxu0 %v1157
            %1379 = vmatmul.mubr.f32.gmra.mxu0 %v1153
            %v1380 = vpop.f32.mrf.mxu0
            %v1381 = vadd.f32 %v1311, %v1380
            %v1382 = vpop.f32.mrf.mxu0
            %1383 = vdwg.mxu0
            %1384 = vmatprep.subr.mxu0 0.0
            %1385 = vmatpush1.msra.mxu0 %v1116
            %1386 = vmatprep.subr.mxu0 0.0
            %1387 = vmatpush1.msra.mxu0 %v1115
            %1388 = vmatprep.subr.mxu0 0.0
            %1389 = vmatpush1.msra.mxu0 %v1114
            %1390 = vmatprep.subr.mxu0 0.0
            %1391 = vmatpush1.msra.mxu0 %v1113
            %1392 = vmatprep.subr.mxu0 0.0
            %1393 = vmatpush1.msra.mxu0 %v1112
            %1394 = vmatprep.subr.mxu0 0.0
            %1395 = vmatpush1.msra.mxu0 %v1111
            %1396 = vmatprep.subr.mxu0 0.0
            %1397 = vmatpush1.msra.mxu0 %v1110
            %1398 = vmatprep.subr.mxu0 0.0
            %1399 = vmatpush1.msra.mxu0 %v1109
            %1400 = vmatprep.subr.mxu0 0.0
            %1401 = vmatpush1.msra.mxu0 %v1108
            %1402 = vmatprep.subr.mxu0 0.0
            %1403 = vmatpush1.msra.mxu0 %v1107
            %1404 = vmatprep.subr.mxu0 0.0
            %1405 = vmatpush1.msra.mxu0 %v1106
            %1406 = vmatprep.subr.mxu0 0.0
            %1407 = vmatpush1.msra.mxu0 %v1105
            %1408 = vmatprep.subr.mxu0 0.0
            %1409 = vmatpush1.msra.mxu0 %v1104
            %1410 = vmatprep.subr.mxu0 0.0
            %1411 = vmatpush1.msra.mxu0 %v1103
            %1412 = vmatprep.subr.mxu0 0.0
            %1413 = vmatpush1.msra.mxu0 %v1102
            %1414 = vmatprep.subr.mxu0 0.0
            %1415 = vmatpush1.msra.mxu0 %v1101
            %1416 = vmatprep.subr.mxu0 0.0
            %1417 = vmatpush2.msra.mxu0 %v1132
            %1418 = vmatprep.subr.mxu0 0.0
            %1419 = vmatpush2.msra.mxu0 %v1131
            %1420 = vmatprep.subr.mxu0 0.0
            %1421 = vmatpush2.msra.mxu0 %v1130
            %1422 = vmatprep.subr.mxu0 0.0
            %1423 = vmatpush2.msra.mxu0 %v1129
            %1424 = vmatprep.subr.mxu0 0.0
            %1425 = vmatpush2.msra.mxu0 %v1128
            %1426 = vmatprep.subr.mxu0 0.0
            %1427 = vmatpush2.msra.mxu0 %v1127
            %1428 = vmatprep.subr.mxu0 0.0
            %1429 = vmatpush2.msra.mxu0 %v1126
            %1430 = vmatprep.subr.mxu0 0.0
            %1431 = vmatpush2.msra.mxu0 %v1125
            %1432 = vmatprep.subr.mxu0 0.0
            %1433 = vmatpush2.msra.mxu0 %v1124
            %1434 = vmatprep.subr.mxu0 0.0
            %1435 = vmatpush2.msra.mxu0 %v1123
            %1436 = vmatprep.subr.mxu0 0.0
            %1437 = vmatpush2.msra.mxu0 %v1122
            %1438 = vmatprep.subr.mxu0 0.0
            %1439 = vmatpush2.msra.mxu0 %v1121
            %1440 = vmatprep.subr.mxu0 0.0
            %1441 = vmatpush2.msra.mxu0 %v1120
            %1442 = vmatprep.subr.mxu0 0.0
            %1443 = vmatpush2.msra.mxu0 %v1119
            %1444 = vmatprep.subr.mxu0 0.0
            %1445 = vmatpush2.msra.mxu0 %v1118
            %1446 = vmatprep.subr.mxu0 0.0
            %1447 = vmatpush2.msra.mxu0 %v1117
            %1448 = vmatprep.mubr.f32.mxu0 %v1165
            %1449 = vmatmul.mubr.f32.gmra.mxu0 %v1161
            %v1450 = vpop.f32.mrf.mxu0
            %v1451 = vadd.f32 %v1381, %v1450
            %v1452 = vpop.f32.mrf.mxu0
            %1453 = vdwg.mxu0
            %v1454 = vmul.f32 %v1451, 0.0078125
            %s1455 = scalar_lea.vmem [#allocation3], 1
            %v1456 = vld [vmem:[%s1455] ss:$2 sm:$0xff]
            %v1458 = vlaneseq
            %v1459 = vshrl.u32 %v1458, 7
            %v1460 = vsub.s32 0, %v1459
            %v1461 = vrot.slane %v1456, %v1460
            %v1462 = vlaneseq
            %v1463 = vshrl.u32 %v1462, 7
            %v1464 = vsub.s32 1, %v1463
            %v1465 = vrot.slane %v1456, %v1464
            %v1466 = vlaneseq
            %v1467 = vshrl.u32 %v1466, 7
            %v1468 = vsub.s32 2, %v1467
            %v1469 = vrot.slane %v1456, %v1468
            %v1470 = vlaneseq
            %v1471 = vshrl.u32 %v1470, 7
            %v1472 = vsub.s32 3, %v1471
            %v1473 = vrot.slane %v1456, %v1472
            %v1474 = vlaneseq
            %v1475 = vshrl.u32 %v1474, 7
            %v1476 = vsub.s32 4, %v1475
            %v1477 = vrot.slane %v1456, %v1476
            %v1478 = vlaneseq
            %v1479 = vshrl.u32 %v1478, 7
            %v1480 = vsub.s32 5, %v1479
            %v1481 = vrot.slane %v1456, %v1480
            %v1482 = vlaneseq
            %v1483 = vshrl.u32 %v1482, 7
            %v1484 = vsub.s32 6, %v1483
            %v1485 = vrot.slane %v1456, %v1484
            %v1486 = vlaneseq
            %v1487 = vshrl.u32 %v1486, 7
            %v1488 = vsub.s32 7, %v1487
            %v1489 = vrot.slane %v1456, %v1488
            %1498 = vmatprep.subr.mxu0 0.0
            %1499 = vmatpush1.msra.mxu0 %v1020
            %1500 = vmatprep.subr.mxu0 0.0
            %1501 = vmatpush1.msra.mxu0 %v1019
            %1502 = vmatprep.subr.mxu0 0.0
            %1503 = vmatpush1.msra.mxu0 %v1018
            %1504 = vmatprep.subr.mxu0 0.0
            %1505 = vmatpush1.msra.mxu0 %v1017
            %1506 = vmatprep.subr.mxu0 0.0
            %1507 = vmatpush1.msra.mxu0 %v1016
            %1508 = vmatprep.subr.mxu0 0.0
            %1509 = vmatpush1.msra.mxu0 %v1015
            %1510 = vmatprep.subr.mxu0 0.0
            %1511 = vmatpush1.msra.mxu0 %v1014
            %1512 = vmatprep.subr.mxu0 0.0
            %1513 = vmatpush1.msra.mxu0 %v1013
            %1514 = vmatprep.subr.mxu0 0.0
            %1515 = vmatpush1.msra.mxu0 %v1012
            %1516 = vmatprep.subr.mxu0 0.0
            %1517 = vmatpush1.msra.mxu0 %v1011
            %1518 = vmatprep.subr.mxu0 0.0
            %1519 = vmatpush1.msra.mxu0 %v1010
            %1520 = vmatprep.subr.mxu0 0.0
            %1521 = vmatpush1.msra.mxu0 %v1009
            %1522 = vmatprep.subr.mxu0 0.0
            %1523 = vmatpush1.msra.mxu0 %v1008
            %1524 = vmatprep.subr.mxu0 0.0
            %1525 = vmatpush1.msra.mxu0 %v1007
            %1526 = vmatprep.subr.mxu0 0.0
            %1527 = vmatpush1.msra.mxu0 %v1006
            %1528 = vmatprep.subr.mxu0 0.0
            %1529 = vmatpush1.msra.mxu0 %v1005
            %1530 = vmatprep.subr.mxu0 0.0
            %1531 = vmatpush2.msra.mxu0 %v1036
            %1532 = vmatprep.subr.mxu0 0.0
            %1533 = vmatpush2.msra.mxu0 %v1035
            %1534 = vmatprep.subr.mxu0 0.0
            %1535 = vmatpush2.msra.mxu0 %v1034
            %1536 = vmatprep.subr.mxu0 0.0
            %1537 = vmatpush2.msra.mxu0 %v1033
            %1538 = vmatprep.subr.mxu0 0.0
            %1539 = vmatpush2.msra.mxu0 %v1032
            %1540 = vmatprep.subr.mxu0 0.0
            %1541 = vmatpush2.msra.mxu0 %v1031
            %1542 = vmatprep.subr.mxu0 0.0
            %1543 = vmatpush2.msra.mxu0 %v1030
            %1544 = vmatprep.subr.mxu0 0.0
            %1545 = vmatpush2.msra.mxu0 %v1029
            %1546 = vmatprep.subr.mxu0 0.0
            %1547 = vmatpush2.msra.mxu0 %v1028
            %1548 = vmatprep.subr.mxu0 0.0
            %1549 = vmatpush2.msra.mxu0 %v1027
            %1550 = vmatprep.subr.mxu0 0.0
            %1551 = vmatpush2.msra.mxu0 %v1026
            %1552 = vmatprep.subr.mxu0 0.0
            %1553 = vmatpush2.msra.mxu0 %v1025
            %1554 = vmatprep.subr.mxu0 0.0
            %1555 = vmatpush2.msra.mxu0 %v1024
            %1556 = vmatprep.subr.mxu0 0.0
            %1557 = vmatpush2.msra.mxu0 %v1023
            %1558 = vmatprep.subr.mxu0 0.0
            %1559 = vmatpush2.msra.mxu0 %v1022
            %1560 = vmatprep.subr.mxu0 0.0
            %1561 = vmatpush2.msra.mxu0 %v1021
            %1562 = vmatprep.mubr.f32.mxu0 %v1465
            %1563 = vmatmul.mubr.f32.gmra.mxu0 %v1461
            %v1564 = vpop.f32.mrf.mxu0
            %v1565 = vadd.f32 0.0, %v1564
            %v1566 = vpop.f32.mrf.mxu0
            %1567 = vdwg.mxu0
            %1568 = vmatprep.subr.mxu0 0.0
            %1569 = vmatpush1.msra.mxu0 %v1052
            %1570 = vmatprep.subr.mxu0 0.0
            %1571 = vmatpush1.msra.mxu0 %v1051
            %1572 = vmatprep.subr.mxu0 0.0
            %1573 = vmatpush1.msra.mxu0 %v1050
            %1574 = vmatprep.subr.mxu0 0.0
            %1575 = vmatpush1.msra.mxu0 %v1049
            %1576 = vmatprep.subr.mxu0 0.0
            %1577 = vmatpush1.msra.mxu0 %v1048
            %1578 = vmatprep.subr.mxu0 0.0
            %1579 = vmatpush1.msra.mxu0 %v1047
            %1580 = vmatprep.subr.mxu0 0.0
            %1581 = vmatpush1.msra.mxu0 %v1046
            %1582 = vmatprep.subr.mxu0 0.0
            %1583 = vmatpush1.msra.mxu0 %v1045
            %1584 = vmatprep.subr.mxu0 0.0
            %1585 = vmatpush1.msra.mxu0 %v1044
            %1586 = vmatprep.subr.mxu0 0.0
            %1587 = vmatpush1.msra.mxu0 %v1043
            %1588 = vmatprep.subr.mxu0 0.0
            %1589 = vmatpush1.msra.mxu0 %v1042
            %1590 = vmatprep.subr.mxu0 0.0
            %1591 = vmatpush1.msra.mxu0 %v1041
            %1592 = vmatprep.subr.mxu0 0.0
            %1593 = vmatpush1.msra.mxu0 %v1040
            %1594 = vmatprep.subr.mxu0 0.0
            %1595 = vmatpush1.msra.mxu0 %v1039
            %1596 = vmatprep.subr.mxu0 0.0
            %1597 = vmatpush1.msra.mxu0 %v1038
            %1598 = vmatprep.subr.mxu0 0.0
            %1599 = vmatpush1.msra.mxu0 %v1037
            %1600 = vmatprep.subr.mxu0 0.0
            %1601 = vmatpush2.msra.mxu0 %v1068
            %1602 = vmatprep.subr.mxu0 0.0
            %1603 = vmatpush2.msra.mxu0 %v1067
            %1604 = vmatprep.subr.mxu0 0.0
            %1605 = vmatpush2.msra.mxu0 %v1066
            %1606 = vmatprep.subr.mxu0 0.0
            %1607 = vmatpush2.msra.mxu0 %v1065
            %1608 = vmatprep.subr.mxu0 0.0
            %1609 = vmatpush2.msra.mxu0 %v1064
            %1610 = vmatprep.subr.mxu0 0.0
            %1611 = vmatpush2.msra.mxu0 %v1063
            %1612 = vmatprep.subr.mxu0 0.0
            %1613 = vmatpush2.msra.mxu0 %v1062
            %1614 = vmatprep.subr.mxu0 0.0
            %1615 = vmatpush2.msra.mxu0 %v1061
            %1616 = vmatprep.subr.mxu0 0.0
            %1617 = vmatpush2.msra.mxu0 %v1060
            %1618 = vmatprep.subr.mxu0 0.0
            %1619 = vmatpush2.msra.mxu0 %v1059
            %1620 = vmatprep.subr.mxu0 0.0
            %1621 = vmatpush2.msra.mxu0 %v1058
            %1622 = vmatprep.subr.mxu0 0.0
            %1623 = vmatpush2.msra.mxu0 %v1057
            %1624 = vmatprep.subr.mxu0 0.0
            %1625 = vmatpush2.msra.mxu0 %v1056
            %1626 = vmatprep.subr.mxu0 0.0
            %1627 = vmatpush2.msra.mxu0 %v1055
            %1628 = vmatprep.subr.mxu0 0.0
            %1629 = vmatpush2.msra.mxu0 %v1054
            %1630 = vmatprep.subr.mxu0 0.0
            %1631 = vmatpush2.msra.mxu0 %v1053
            %1632 = vmatprep.mubr.f32.mxu0 %v1473
            %1633 = vmatmul.mubr.f32.gmra.mxu0 %v1469
            %v1634 = vpop.f32.mrf.mxu0
            %v1635 = vadd.f32 %v1565, %v1634
            %v1636 = vpop.f32.mrf.mxu0
            %1637 = vdwg.mxu0
            %1638 = vmatprep.subr.mxu0 0.0
            %1639 = vmatpush1.msra.mxu0 %v1084
            %1640 = vmatprep.subr.mxu0 0.0
            %1641 = vmatpush1.msra.mxu0 %v1083
            %1642 = vmatprep.subr.mxu0 0.0
            %1643 = vmatpush1.msra.mxu0 %v1082
            %1644 = vmatprep.subr.mxu0 0.0
            %1645 = vmatpush1.msra.mxu0 %v1081
            %1646 = vmatprep.subr.mxu0 0.0
            %1647 = vmatpush1.msra.mxu0 %v1080
            %1648 = vmatprep.subr.mxu0 0.0
            %1649 = vmatpush1.msra.mxu0 %v1079
            %1650 = vmatprep.subr.mxu0 0.0
            %1651 = vmatpush1.msra.mxu0 %v1078
            %1652 = vmatprep.subr.mxu0 0.0
            %1653 = vmatpush1.msra.mxu0 %v1077
            %1654 = vmatprep.subr.mxu0 0.0
            %1655 = vmatpush1.msra.mxu0 %v1076
            %1656 = vmatprep.subr.mxu0 0.0
            %1657 = vmatpush1.msra.mxu0 %v1075
            %1658 = vmatprep.subr.mxu0 0.0
            %1659 = vmatpush1.msra.mxu0 %v1074
            %1660 = vmatprep.subr.mxu0 0.0
            %1661 = vmatpush1.msra.mxu0 %v1073
            %1662 = vmatprep.subr.mxu0 0.0
            %1663 = vmatpush1.msra.mxu0 %v1072
            %1664 = vmatprep.subr.mxu0 0.0
            %1665 = vmatpush1.msra.mxu0 %v1071
            %1666 = vmatprep.subr.mxu0 0.0
            %1667 = vmatpush1.msra.mxu0 %v1070
            %1668 = vmatprep.subr.mxu0 0.0
            %1669 = vmatpush1.msra.mxu0 %v1069
            %1670 = vmatprep.subr.mxu0 0.0
            %1671 = vmatpush2.msra.mxu0 %v1100
            %1672 = vmatprep.subr.mxu0 0.0
            %1673 = vmatpush2.msra.mxu0 %v1099
            %1674 = vmatprep.subr.mxu0 0.0
            %1675 = vmatpush2.msra.mxu0 %v1098
            %1676 = vmatprep.subr.mxu0 0.0
            %1677 = vmatpush2.msra.mxu0 %v1097
            %1678 = vmatprep.subr.mxu0 0.0
            %1679 = vmatpush2.msra.mxu0 %v1096
            %1680 = vmatprep.subr.mxu0 0.0
            %1681 = vmatpush2.msra.mxu0 %v1095
            %1682 = vmatprep.subr.mxu0 0.0
            %1683 = vmatpush2.msra.mxu0 %v1094
            %1684 = vmatprep.subr.mxu0 0.0
            %1685 = vmatpush2.msra.mxu0 %v1093
            %1686 = vmatprep.subr.mxu0 0.0
            %1687 = vmatpush2.msra.mxu0 %v1092
            %1688 = vmatprep.subr.mxu0 0.0
            %1689 = vmatpush2.msra.mxu0 %v1091
            %1690 = vmatprep.subr.mxu0 0.0
            %1691 = vmatpush2.msra.mxu0 %v1090
            %1692 = vmatprep.subr.mxu0 0.0
            %1693 = vmatpush2.msra.mxu0 %v1089
            %1694 = vmatprep.subr.mxu0 0.0
            %1695 = vmatpush2.msra.mxu0 %v1088
            %1696 = vmatprep.subr.mxu0 0.0
            %1697 = vmatpush2.msra.mxu0 %v1087
            %1698 = vmatprep.subr.mxu0 0.0
            %1699 = vmatpush2.msra.mxu0 %v1086
            %1700 = vmatprep.subr.mxu0 0.0
            %1701 = vmatpush2.msra.mxu0 %v1085
            %1702 = vmatprep.mubr.f32.mxu0 %v1481
            %1703 = vmatmul.mubr.f32.gmra.mxu0 %v1477
            %v1704 = vpop.f32.mrf.mxu0
            %v1705 = vadd.f32 %v1635, %v1704
            %v1706 = vpop.f32.mrf.mxu0
            %1707 = vdwg.mxu0
            %1708 = vmatprep.subr.mxu0 0.0
            %1709 = vmatpush1.msra.mxu0 %v1116
            %1710 = vmatprep.subr.mxu0 0.0
            %1711 = vmatpush1.msra.mxu0 %v1115
            %1712 = vmatprep.subr.mxu0 0.0
            %1713 = vmatpush1.msra.mxu0 %v1114
            %1714 = vmatprep.subr.mxu0 0.0
            %1715 = vmatpush1.msra.mxu0 %v1113
            %1716 = vmatprep.subr.mxu0 0.0
            %1717 = vmatpush1.msra.mxu0 %v1112
            %1718 = vmatprep.subr.mxu0 0.0
            %1719 = vmatpush1.msra.mxu0 %v1111
            %1720 = vmatprep.subr.mxu0 0.0
            %1721 = vmatpush1.msra.mxu0 %v1110
            %1722 = vmatprep.subr.mxu0 0.0
            %1723 = vmatpush1.msra.mxu0 %v1109
            %1724 = vmatprep.subr.mxu0 0.0
            %1725 = vmatpush1.msra.mxu0 %v1108
            %1726 = vmatprep.subr.mxu0 0.0
            %1727 = vmatpush1.msra.mxu0 %v1107
            %1728 = vmatprep.subr.mxu0 0.0
            %1729 = vmatpush1.msra.mxu0 %v1106
            %1730 = vmatprep.subr.mxu0 0.0
            %1731 = vmatpush1.msra.mxu0 %v1105
            %1732 = vmatprep.subr.mxu0 0.0
            %1733 = vmatpush1.msra.mxu0 %v1104
            %1734 = vmatprep.subr.mxu0 0.0
            %1735 = vmatpush1.msra.mxu0 %v1103
            %1736 = vmatprep.subr.mxu0 0.0
            %1737 = vmatpush1.msra.mxu0 %v1102
            %1738 = vmatprep.subr.mxu0 0.0
            %1739 = vmatpush1.msra.mxu0 %v1101
            %1740 = vmatprep.subr.mxu0 0.0
            %1741 = vmatpush2.msra.mxu0 %v1132
            %1742 = vmatprep.subr.mxu0 0.0
            %1743 = vmatpush2.msra.mxu0 %v1131
            %1744 = vmatprep.subr.mxu0 0.0
            %1745 = vmatpush2.msra.mxu0 %v1130
            %1746 = vmatprep.subr.mxu0 0.0
            %1747 = vmatpush2.msra.mxu0 %v1129
            %1748 = vmatprep.subr.mxu0 0.0
            %1749 = vmatpush2.msra.mxu0 %v1128
            %1750 = vmatprep.subr.mxu0 0.0
            %1751 = vmatpush2.msra.mxu0 %v1127
            %1752 = vmatprep.subr.mxu0 0.0
            %1753 = vmatpush2.msra.mxu0 %v1126
            %1754 = vmatprep.subr.mxu0 0.0
            %1755 = vmatpush2.msra.mxu0 %v1125
            %1756 = vmatprep.subr.mxu0 0.0
            %1757 = vmatpush2.msra.mxu0 %v1124
            %1758 = vmatprep.subr.mxu0 0.0
            %1759 = vmatpush2.msra.mxu0 %v1123
            %1760 = vmatprep.subr.mxu0 0.0
            %1761 = vmatpush2.msra.mxu0 %v1122
            %1762 = vmatprep.subr.mxu0 0.0
            %1763 = vmatpush2.msra.mxu0 %v1121
            %1764 = vmatprep.subr.mxu0 0.0
            %1765 = vmatpush2.msra.mxu0 %v1120
            %1766 = vmatprep.subr.mxu0 0.0
            %1767 = vmatpush2.msra.mxu0 %v1119
            %1768 = vmatprep.subr.mxu0 0.0
            %1769 = vmatpush2.msra.mxu0 %v1118
            %1770 = vmatprep.subr.mxu0 0.0
            %1771 = vmatpush2.msra.mxu0 %v1117
            %1772 = vmatprep.mubr.f32.mxu0 %v1489
            %1773 = vmatmul.mubr.f32.gmra.mxu0 %v1485
            %v1774 = vpop.f32.mrf.mxu0
            %v1775 = vadd.f32 %v1705, %v1774
            %v1776 = vpop.f32.mrf.mxu0
            %1777 = vdwg.mxu0
            %v1778 = vmul.f32 %v1775, 0.0078125
            %v1779 = vmul.f32 %v1454, %v1454
            %v1780 = vsub.f32 %v1778, %v1779
            %v1781 = vmax.f32 %v1780, 0.0
            %v1782 = vld [vmem:[%s4] sm:$0x1]
            %v1783 = vadd.f32 %v1781, 1e-05
            %v1784 = vrsqrt.pop %v1783
            %v1785 = vmul.f32 %v1782, %v1784
            %v1786 = vld [vmem:[#allocation8] sm:$0x1]
            %v1787 = vmul.f32 %v1454, %v1785
            %v1788 = vsub.f32 %v1786, %v1787
            %v1789 = vld [vmem:[%s3] sm:$0xff]
            %v1790 = vld [vmem:[%s3 + $0x8] sm:$0xff]
            %v1791 = vld [vmem:[%s3 + $0x10] sm:$0xff]
            %v1792 = vld [vmem:[%s3 + $0x18] sm:$0xff]
            %v1793 = vld [vmem:[%s3 + $0x20] sm:$0xff]
            %v1794 = vld [vmem:[%s3 + $0x28] sm:$0xff]
            %v1795 = vld [vmem:[%s3 + $0x30] sm:$0xff]
            %v1796 = vld [vmem:[%s3 + $0x38] sm:$0xff]
            %v1797 = vld [vmem:[%s3 + $0x40] sm:$0xff]
            %v1798 = vld [vmem:[%s3 + $0x48] sm:$0xff]
            %v1799 = vld [vmem:[%s3 + $0x50] sm:$0xff]
            %v1800 = vld [vmem:[%s3 + $0x58] sm:$0xff]
            %v1801 = vld [vmem:[%s3 + $0x60] sm:$0xff]
            %v1802 = vld [vmem:[%s3 + $0x68] sm:$0xff]
            %v1803 = vld [vmem:[%s3 + $0x70] sm:$0xff]
            %v1804 = vld [vmem:[%s3 + $0x78] sm:$0xff]
            %v1805 = vld [vmem:[%s3 + $0x80] sm:$0xff]
            %v1806 = vld [vmem:[%s3 + $0x88] sm:$0xff]
            %v1807 = vld [vmem:[%s3 + $0x90] sm:$0xff]
            %v1808 = vld [vmem:[%s3 + $0x98] sm:$0xff]
            %v1809 = vld [vmem:[%s3 + $0xa0] sm:$0xff]
            %v1810 = vld [vmem:[%s3 + $0xa8] sm:$0xff]
            %v1811 = vld [vmem:[%s3 + $0xb0] sm:$0xff]
            %v1812 = vld [vmem:[%s3 + $0xb8] sm:$0xff]
            %v1813 = vld [vmem:[%s3 + $0xc0] sm:$0xff]
            %v1814 = vld [vmem:[%s3 + $0xc8] sm:$0xff]
            %v1815 = vld [vmem:[%s3 + $0xd0] sm:$0xff]
            %v1816 = vld [vmem:[%s3 + $0xd8] sm:$0xff]
            %v1817 = vld [vmem:[%s3 + $0xe0] sm:$0xff]
            %v1818 = vld [vmem:[%s3 + $0xe8] sm:$0xff]
            %v1819 = vld [vmem:[%s3 + $0xf0] sm:$0xff]
            %v1820 = vld [vmem:[%s3 + $0xf8] sm:$0xff]
            %vm1821 = vcmask 261120
            %v1823 = vsel %vm1821, %v1785, 0
            %1825 = vmatprep.subr.mxu0 0.0
            %1826 = vmatpush1.msra.mxu0 0.0
            %1827 = vmatprep.subr.mxu0 0.0
            %1828 = vmatpush1.msra.mxu0 0.0
            %1829 = vmatprep.subr.mxu0 0.0
            %1830 = vmatpush1.msra.mxu0 0.0
            %1831 = vmatprep.subr.mxu0 0.0
            %1832 = vmatpush1.msra.mxu0 0.0
            %1833 = vmatprep.subr.mxu0 0.0
            %1834 = vmatpush1.msra.mxu0 0.0
            %1835 = vmatprep.subr.mxu0 0.0
            %1836 = vmatpush1.msra.mxu0 0.0
            %1837 = vmatprep.subr.mxu0 0.0
            %1838 = vmatpush1.msra.mxu0 0.0
            %1839 = vmatprep.subr.mxu0 0.0
            %1840 = vmatpush1.msra.mxu0 0.0
            %1841 = vmatprep.subr.mxu0 0.0
            %1842 = vmatpush1.msra.mxu0 0.0
            %1843 = vmatprep.subr.mxu0 0.0
            %1844 = vmatpush1.msra.mxu0 0.0
            %1845 = vmatprep.subr.mxu0 0.0
            %1846 = vmatpush1.msra.mxu0 0.0
            %1847 = vmatprep.subr.mxu0 0.0
            %1848 = vmatpush1.msra.mxu0 0.0
            %1849 = vmatprep.subr.mxu0 %v1814
            %1850 = vmatpush1.msra.mxu0 %v1813
            %1851 = vmatprep.subr.mxu0 %v1806
            %1852 = vmatpush1.msra.mxu0 %v1805
            %1853 = vmatprep.subr.mxu0 %v1798
            %1854 = vmatpush1.msra.mxu0 %v1797
            %1855 = vmatprep.subr.mxu0 %v1790
            %1856 = vmatpush1.msra.mxu0 %v1789
            %1857 = vmatprep.subr.mxu0 0.0
            %1858 = vmatpush2.msra.mxu0 0.0
            %1859 = vmatprep.subr.mxu0 0.0
            %1860 = vmatpush2.msra.mxu0 0.0
            %1861 = vmatprep.subr.mxu0 0.0
            %1862 = vmatpush2.msra.mxu0 0.0
            %1863 = vmatprep.subr.mxu0 0.0
            %1864 = vmatpush2.msra.mxu0 0.0
            %1865 = vmatprep.subr.mxu0 0.0
            %1866 = vmatpush2.msra.mxu0 0.0
            %1867 = vmatprep.subr.mxu0 0.0
            %1868 = vmatpush2.msra.mxu0 0.0
            %1869 = vmatprep.subr.mxu0 0.0
            %1870 = vmatpush2.msra.mxu0 0.0
            %1871 = vmatprep.subr.mxu0 0.0
            %1872 = vmatpush2.msra.mxu0 0.0
            %1873 = vmatprep.subr.mxu0 0.0
            %1874 = vmatpush2.msra.mxu0 0.0
            %1875 = vmatprep.subr.mxu0 0.0
            %1876 = vmatpush2.msra.mxu0 0.0
            %1877 = vmatprep.subr.mxu0 0.0
            %1878 = vmatpush2.msra.mxu0 0.0
            %1879 = vmatprep.subr.mxu0 0.0
            %1880 = vmatpush2.msra.mxu0 0.0
            %1881 = vmatprep.subr.mxu0 0.0
            %1882 = vmatpush2.msra.mxu0 0.0
            %1883 = vmatprep.subr.mxu0 0.0
            %1884 = vmatpush2.msra.mxu0 0.0
            %1885 = vmatprep.subr.mxu0 0.0
            %1886 = vmatpush2.msra.mxu0 0.0
            %1887 = vmatprep.subr.mxu0 0.0
            %1888 = vmatpush2.msra.mxu0 0.0
            %1889 = vmatprep.mubr.f32.mxu0 0.0
            %1890 = vmatmul.mubr.f32.gmra.mxu0 %v1823
            %v1891 = vpop.f32.mrf.mxu0
            %v1892 = vadd.f32 0.0, %v1891
            %v1893 = vpop.f32.mrf.mxu0
            %v1894 = vadd.f32 0.0, %v1893
            %1895 = vdwg.mxu0
            %1896 = vmatprep.subr.mxu0 0.0
            %1897 = vmatpush1.msra.mxu0 0.0
            %1898 = vmatprep.subr.mxu0 0.0
            %1899 = vmatpush1.msra.mxu0 0.0
            %1900 = vmatprep.subr.mxu0 0.0
            %1901 = vmatpush1.msra.mxu0 0.0
            %1902 = vmatprep.subr.mxu0 0.0
            %1903 = vmatpush1.msra.mxu0 0.0
            %1904 = vmatprep.subr.mxu0 0.0
            %1905 = vmatpush1.msra.mxu0 0.0
            %1906 = vmatprep.subr.mxu0 0.0
            %1907 = vmatpush1.msra.mxu0 0.0
            %1908 = vmatprep.subr.mxu0 0.0
            %1909 = vmatpush1.msra.mxu0 0.0
            %1910 = vmatprep.subr.mxu0 0.0
            %1911 = vmatpush1.msra.mxu0 0.0
            %1912 = vmatprep.subr.mxu0 0.0
            %1913 = vmatpush1.msra.mxu0 0.0
            %1914 = vmatprep.subr.mxu0 0.0
            %1915 = vmatpush1.msra.mxu0 0.0
            %1916 = vmatprep.subr.mxu0 0.0
            %1917 = vmatpush1.msra.mxu0 0.0
            %1918 = vmatprep.subr.mxu0 0.0
            %1919 = vmatpush1.msra.mxu0 0.0
            %1920 = vmatprep.subr.mxu0 %v1816
            %1921 = vmatpush1.msra.mxu0 %v1815
            %1922 = vmatprep.subr.mxu0 %v1808
            %1923 = vmatpush1.msra.mxu0 %v1807
            %1924 = vmatprep.subr.mxu0 %v1800
            %1925 = vmatpush1.msra.mxu0 %v1799
            %1926 = vmatprep.subr.mxu0 %v1792
            %1927 = vmatpush1.msra.mxu0 %v1791
            %1928 = vmatprep.subr.mxu0 0.0
            %1929 = vmatpush2.msra.mxu0 0.0
            %1930 = vmatprep.subr.mxu0 0.0
            %1931 = vmatpush2.msra.mxu0 0.0
            %1932 = vmatprep.subr.mxu0 0.0
            %1933 = vmatpush2.msra.mxu0 0.0
            %1934 = vmatprep.subr.mxu0 0.0
            %1935 = vmatpush2.msra.mxu0 0.0
            %1936 = vmatprep.subr.mxu0 0.0
            %1937 = vmatpush2.msra.mxu0 0.0
            %1938 = vmatprep.subr.mxu0 0.0
            %1939 = vmatpush2.msra.mxu0 0.0
            %1940 = vmatprep.subr.mxu0 0.0
            %1941 = vmatpush2.msra.mxu0 0.0
            %1942 = vmatprep.subr.mxu0 0.0
            %1943 = vmatpush2.msra.mxu0 0.0
            %1944 = vmatprep.subr.mxu0 0.0
            %1945 = vmatpush2.msra.mxu0 0.0
            %1946 = vmatprep.subr.mxu0 0.0
            %1947 = vmatpush2.msra.mxu0 0.0
            %1948 = vmatprep.subr.mxu0 0.0
            %1949 = vmatpush2.msra.mxu0 0.0
            %1950 = vmatprep.subr.mxu0 0.0
            %1951 = vmatpush2.msra.mxu0 0.0
            %1952 = vmatprep.subr.mxu0 0.0
            %1953 = vmatpush2.msra.mxu0 0.0
            %1954 = vmatprep.subr.mxu0 0.0
            %1955 = vmatpush2.msra.mxu0 0.0
            %1956 = vmatprep.subr.mxu0 0.0
            %1957 = vmatpush2.msra.mxu0 0.0
            %1958 = vmatprep.subr.mxu0 0.0
            %1959 = vmatpush2.msra.mxu0 0.0
            %1960 = vmatprep.mubr.f32.mxu0 0.0
            %1961 = vmatmul.mubr.f32.gmra.mxu0 %v1823
            %v1962 = vpop.f32.mrf.mxu0
            %v1963 = vadd.f32 0.0, %v1962
            %v1964 = vpop.f32.mrf.mxu0
            %v1965 = vadd.f32 0.0, %v1964
            %1966 = vdwg.mxu0
            %1967 = vmatprep.subr.mxu0 0.0
            %1968 = vmatpush1.msra.mxu0 0.0
            %1969 = vmatprep.subr.mxu0 0.0
            %1970 = vmatpush1.msra.mxu0 0.0
            %1971 = vmatprep.subr.mxu0 0.0
            %1972 = vmatpush1.msra.mxu0 0.0
            %1973 = vmatprep.subr.mxu0 0.0
            %1974 = vmatpush1.msra.mxu0 0.0
            %1975 = vmatprep.subr.mxu0 0.0
            %1976 = vmatpush1.msra.mxu0 0.0
            %1977 = vmatprep.subr.mxu0 0.0
            %1978 = vmatpush1.msra.mxu0 0.0
            %1979 = vmatprep.subr.mxu0 0.0
            %1980 = vmatpush1.msra.mxu0 0.0
            %1981 = vmatprep.subr.mxu0 0.0
            %1982 = vmatpush1.msra.mxu0 0.0
            %1983 = vmatprep.subr.mxu0 0.0
            %1984 = vmatpush1.msra.mxu0 0.0
            %1985 = vmatprep.subr.mxu0 0.0
            %1986 = vmatpush1.msra.mxu0 0.0
            %1987 = vmatprep.subr.mxu0 0.0
            %1988 = vmatpush1.msra.mxu0 0.0
            %1989 = vmatprep.subr.mxu0 0.0
            %1990 = vmatpush1.msra.mxu0 0.0
            %1991 = vmatprep.subr.mxu0 %v1818
            %1992 = vmatpush1.msra.mxu0 %v1817
            %1993 = vmatprep.subr.mxu0 %v1810
            %1994 = vmatpush1.msra.mxu0 %v1809
            %1995 = vmatprep.subr.mxu0 %v1802
            %1996 = vmatpush1.msra.mxu0 %v1801
            %1997 = vmatprep.subr.mxu0 %v1794
            %1998 = vmatpush1.msra.mxu0 %v1793
            %1999 = vmatprep.subr.mxu0 0.0
            %2000 = vmatpush2.msra.mxu0 0.0
            %2001 = vmatprep.subr.mxu0 0.0
            %2002 = vmatpush2.msra.mxu0 0.0
            %2003 = vmatprep.subr.mxu0 0.0
            %2004 = vmatpush2.msra.mxu0 0.0
            %2005 = vmatprep.subr.mxu0 0.0
            %2006 = vmatpush2.msra.mxu0 0.0
            %2007 = vmatprep.subr.mxu0 0.0
            %2008 = vmatpush2.msra.mxu0 0.0
            %2009 = vmatprep.subr.mxu0 0.0
            %2010 = vmatpush2.msra.mxu0 0.0
            %2011 = vmatprep.subr.mxu0 0.0
            %2012 = vmatpush2.msra.mxu0 0.0
            %2013 = vmatprep.subr.mxu0 0.0
            %2014 = vmatpush2.msra.mxu0 0.0
            %2015 = vmatprep.subr.mxu0 0.0
            %2016 = vmatpush2.msra.mxu0 0.0
            %2017 = vmatprep.subr.mxu0 0.0
            %2018 = vmatpush2.msra.mxu0 0.0
            %2019 = vmatprep.subr.mxu0 0.0
            %2020 = vmatpush2.msra.mxu0 0.0
            %2021 = vmatprep.subr.mxu0 0.0
            %2022 = vmatpush2.msra.mxu0 0.0
            %2023 = vmatprep.subr.mxu0 0.0
            %2024 = vmatpush2.msra.mxu0 0.0
            %2025 = vmatprep.subr.mxu0 0.0
            %2026 = vmatpush2.msra.mxu0 0.0
            %2027 = vmatprep.subr.mxu0 0.0
            %2028 = vmatpush2.msra.mxu0 0.0
            %2029 = vmatprep.subr.mxu0 0.0
            %2030 = vmatpush2.msra.mxu0 0.0
            %2031 = vmatprep.mubr.f32.mxu0 0.0
            %2032 = vmatmul.mubr.f32.gmra.mxu0 %v1823
            %v2033 = vpop.f32.mrf.mxu0
            %v2034 = vadd.f32 0.0, %v2033
            %v2035 = vpop.f32.mrf.mxu0
            %v2036 = vadd.f32 0.0, %v2035
            %2037 = vdwg.mxu0
            %2038 = vmatprep.subr.mxu0 0.0
            %2039 = vmatpush1.msra.mxu0 0.0
            %2040 = vmatprep.subr.mxu0 0.0
            %2041 = vmatpush1.msra.mxu0 0.0
            %2042 = vmatprep.subr.mxu0 0.0
            %2043 = vmatpush1.msra.mxu0 0.0
            %2044 = vmatprep.subr.mxu0 0.0
            %2045 = vmatpush1.msra.mxu0 0.0
            %2046 = vmatprep.subr.mxu0 0.0
            %2047 = vmatpush1.msra.mxu0 0.0
            %2048 = vmatprep.subr.mxu0 0.0
            %2049 = vmatpush1.msra.mxu0 0.0
            %2050 = vmatprep.subr.mxu0 0.0
            %2051 = vmatpush1.msra.mxu0 0.0
            %2052 = vmatprep.subr.mxu0 0.0
            %2053 = vmatpush1.msra.mxu0 0.0
            %2054 = vmatprep.subr.mxu0 0.0
            %2055 = vmatpush1.msra.mxu0 0.0
            %2056 = vmatprep.subr.mxu0 0.0
            %2057 = vmatpush1.msra.mxu0 0.0
            %2058 = vmatprep.subr.mxu0 0.0
            %2059 = vmatpush1.msra.mxu0 0.0
            %2060 = vmatprep.subr.mxu0 0.0
            %2061 = vmatpush1.msra.mxu0 0.0
            %2062 = vmatprep.subr.mxu0 %v1820
            %2063 = vmatpush1.msra.mxu0 %v1819
            %2064 = vmatprep.subr.mxu0 %v1812
            %2065 = vmatpush1.msra.mxu0 %v1811
            %2066 = vmatprep.subr.mxu0 %v1804
            %2067 = vmatpush1.msra.mxu0 %v1803
            %2068 = vmatprep.subr.mxu0 %v1796
            %2069 = vmatpush1.msra.mxu0 %v1795
            %2070 = vmatprep.subr.mxu0 0.0
            %2071 = vmatpush2.msra.mxu0 0.0
            %2072 = vmatprep.subr.mxu0 0.0
            %2073 = vmatpush2.msra.mxu0 0.0
            %2074 = vmatprep.subr.mxu0 0.0
            %2075 = vmatpush2.msra.mxu0 0.0
            %2076 = vmatprep.subr.mxu0 0.0
            %2077 = vmatpush2.msra.mxu0 0.0
            %2078 = vmatprep.subr.mxu0 0.0
            %2079 = vmatpush2.msra.mxu0 0.0
            %2080 = vmatprep.subr.mxu0 0.0
            %2081 = vmatpush2.msra.mxu0 0.0
            %2082 = vmatprep.subr.mxu0 0.0
            %2083 = vmatpush2.msra.mxu0 0.0
            %2084 = vmatprep.subr.mxu0 0.0
            %2085 = vmatpush2.msra.mxu0 0.0
            %2086 = vmatprep.subr.mxu0 0.0
            %2087 = vmatpush2.msra.mxu0 0.0
            %2088 = vmatprep.subr.mxu0 0.0
            %2089 = vmatpush2.msra.mxu0 0.0
            %2090 = vmatprep.subr.mxu0 0.0
            %2091 = vmatpush2.msra.mxu0 0.0
            %2092 = vmatprep.subr.mxu0 0.0
            %2093 = vmatpush2.msra.mxu0 0.0
            %2094 = vmatprep.subr.mxu0 0.0
            %2095 = vmatpush2.msra.mxu0 0.0
            %2096 = vmatprep.subr.mxu0 0.0
            %2097 = vmatpush2.msra.mxu0 0.0
            %2098 = vmatprep.subr.mxu0 0.0
            %2099 = vmatpush2.msra.mxu0 0.0
            %2100 = vmatprep.subr.mxu0 0.0
            %2101 = vmatpush2.msra.mxu0 0.0
            %2102 = vmatprep.mubr.f32.mxu0 0.0
            %2103 = vmatmul.mubr.f32.gmra.mxu0 %v1823
            %v2104 = vpop.f32.mrf.mxu0
            %v2105 = vadd.f32 0.0, %v2104
            %v2106 = vpop.f32.mrf.mxu0
            %v2107 = vadd.f32 0.0, %v2106
            %2108 = vdwg.mxu0
            %v2117 = vcombine.low %v1892, %v1894
            %v2118 = vcombine.low %v1963, %v1965
            %v2119 = vcombine.low %v2034, %v2036
            %v2120 = vcombine.low %v2105, %v2107
            %v2122 = vunpack.c.l.s4 1966171168
            %v2123 = vunpack.c.0.s8 %v2122
            %v2124 = vlaneseq
            %v2125 = vshrl.u32 %v2124, 7
            %v2126 = vsub.s32 %v2123, %v2125
            %v2127 = vrot.slane %v2117, %v2126
            %v2129 = vunpack.c.l.s4 1966171168
            %v2130 = vunpack.c.0.s8 %v2129
            %v2131 = vlaneseq
            %v2132 = vshrl.u32 %v2131, 7
            %v2133 = vsub.s32 %v2130, %v2132
            %v2134 = vrot.slane %v2118, %v2133
            %v2136 = vunpack.c.l.s4 1966171168
            %v2137 = vunpack.c.0.s8 %v2136
            %v2138 = vlaneseq
            %v2139 = vshrl.u32 %v2138, 7
            %v2140 = vsub.s32 %v2137, %v2139
            %v2141 = vrot.slane %v2119, %v2140
            %v2143 = vunpack.c.l.s4 1966171168
            %v2144 = vunpack.c.0.s8 %v2143
            %v2145 = vlaneseq
            %v2146 = vshrl.u32 %v2145, 7
            %v2147 = vsub.s32 %v2144, %v2146
            %v2148 = vrot.slane %v2120, %v2147
            %v2149 = vcombine.low %v2127, %v2134
            %v2150 = vcombine.low %v2141, %v2148
            %v2152 = vunpack.c.l.s4 1966171168
            %v2153 = vunpack.c.0.s8 %v2152
            %v2154 = vlaneseq
            %v2155 = vshrl.u32 %v2154, 7
            %v2156 = vsub.s32 %v2153, %v2155
            %v2157 = vrot.slane %v2149, %v2156
            %v2159 = vunpack.c.l.s4 1966171168
            %v2160 = vunpack.c.0.s8 %v2159
            %v2161 = vlaneseq
            %v2162 = vshrl.u32 %v2161, 7
            %v2163 = vsub.s32 %v2160, %v2162
            %v2164 = vrot.slane %v2150, %v2163
            %v2165 = vcombine.low %v2157, %v2164
            %2167 = vst [vmem:[#allocation4] ss:$2 sm:$0xff] %v2165
            %v2168 = vld [vmem:[%s3] sm:$0xff]
            %v2169 = vld [vmem:[%s3 + $0x8] sm:$0xff]
            %v2170 = vld [vmem:[%s3 + $0x10] sm:$0xff]
            %v2171 = vld [vmem:[%s3 + $0x18] sm:$0xff]
            %v2172 = vld [vmem:[%s3 + $0x20] sm:$0xff]
            %v2173 = vld [vmem:[%s3 + $0x28] sm:$0xff]
            %v2174 = vld [vmem:[%s3 + $0x30] sm:$0xff]
            %v2175 = vld [vmem:[%s3 + $0x38] sm:$0xff]
            %v2176 = vld [vmem:[%s3 + $0x40] sm:$0xff]
            %v2177 = vld [vmem:[%s3 + $0x48] sm:$0xff]
            %v2178 = vld [vmem:[%s3 + $0x50] sm:$0xff]
            %v2179 = vld [vmem:[%s3 + $0x58] sm:$0xff]
            %v2180 = vld [vmem:[%s3 + $0x60] sm:$0xff]
            %v2181 = vld [vmem:[%s3 + $0x68] sm:$0xff]
            %v2182 = vld [vmem:[%s3 + $0x70] sm:$0xff]
            %v2183 = vld [vmem:[%s3 + $0x78] sm:$0xff]
            %v2184 = vld [vmem:[%s3 + $0x80] sm:$0xff]
            %v2185 = vld [vmem:[%s3 + $0x88] sm:$0xff]
            %v2186 = vld [vmem:[%s3 + $0x90] sm:$0xff]
            %v2187 = vld [vmem:[%s3 + $0x98] sm:$0xff]
            %v2188 = vld [vmem:[%s3 + $0xa0] sm:$0xff]
            %v2189 = vld [vmem:[%s3 + $0xa8] sm:$0xff]
            %v2190 = vld [vmem:[%s3 + $0xb0] sm:$0xff]
            %v2191 = vld [vmem:[%s3 + $0xb8] sm:$0xff]
            %v2192 = vld [vmem:[%s3 + $0xc0] sm:$0xff]
            %v2193 = vld [vmem:[%s3 + $0xc8] sm:$0xff]
            %v2194 = vld [vmem:[%s3 + $0xd0] sm:$0xff]
            %v2195 = vld [vmem:[%s3 + $0xd8] sm:$0xff]
            %v2196 = vld [vmem:[%s3 + $0xe0] sm:$0xff]
            %v2197 = vld [vmem:[%s3 + $0xe8] sm:$0xff]
            %v2198 = vld [vmem:[%s3 + $0xf0] sm:$0xff]
            %v2199 = vld [vmem:[%s3 + $0xf8] sm:$0xff]
            %v2201 = vsel %vm1821, %v1788, 0
            %2203 = vmatprep.subr.mxu0 0.0
            %2204 = vmatpush1.msra.mxu0 0.0
            %2205 = vmatprep.subr.mxu0 0.0
            %2206 = vmatpush1.msra.mxu0 0.0
            %2207 = vmatprep.subr.mxu0 0.0
            %2208 = vmatpush1.msra.mxu0 0.0
            %2209 = vmatprep.subr.mxu0 0.0
            %2210 = vmatpush1.msra.mxu0 0.0
            %2211 = vmatprep.subr.mxu0 0.0
            %2212 = vmatpush1.msra.mxu0 0.0
            %2213 = vmatprep.subr.mxu0 0.0
            %2214 = vmatpush1.msra.mxu0 0.0
            %2215 = vmatprep.subr.mxu0 0.0
            %2216 = vmatpush1.msra.mxu0 0.0
            %2217 = vmatprep.subr.mxu0 0.0
            %2218 = vmatpush1.msra.mxu0 0.0
            %2219 = vmatprep.subr.mxu0 0.0
            %2220 = vmatpush1.msra.mxu0 0.0
            %2221 = vmatprep.subr.mxu0 0.0
            %2222 = vmatpush1.msra.mxu0 0.0
            %2223 = vmatprep.subr.mxu0 0.0
            %2224 = vmatpush1.msra.mxu0 0.0
            %2225 = vmatprep.subr.mxu0 0.0
            %2226 = vmatpush1.msra.mxu0 0.0
            %2227 = vmatprep.subr.mxu0 %v2193
            %2228 = vmatpush1.msra.mxu0 %v2192
            %2229 = vmatprep.subr.mxu0 %v2185
            %2230 = vmatpush1.msra.mxu0 %v2184
            %2231 = vmatprep.subr.mxu0 %v2177
            %2232 = vmatpush1.msra.mxu0 %v2176
            %2233 = vmatprep.subr.mxu0 %v2169
            %2234 = vmatpush1.msra.mxu0 %v2168
            %2235 = vmatprep.subr.mxu0 0.0
            %2236 = vmatpush2.msra.mxu0 0.0
            %2237 = vmatprep.subr.mxu0 0.0
            %2238 = vmatpush2.msra.mxu0 0.0
            %2239 = vmatprep.subr.mxu0 0.0
            %2240 = vmatpush2.msra.mxu0 0.0
            %2241 = vmatprep.subr.mxu0 0.0
            %2242 = vmatpush2.msra.mxu0 0.0
            %2243 = vmatprep.subr.mxu0 0.0
            %2244 = vmatpush2.msra.mxu0 0.0
            %2245 = vmatprep.subr.mxu0 0.0
            %2246 = vmatpush2.msra.mxu0 0.0
            %2247 = vmatprep.subr.mxu0 0.0
            %2248 = vmatpush2.msra.mxu0 0.0
            %2249 = vmatprep.subr.mxu0 0.0
            %2250 = vmatpush2.msra.mxu0 0.0
            %2251 = vmatprep.subr.mxu0 0.0
            %2252 = vmatpush2.msra.mxu0 0.0
            %2253 = vmatprep.subr.mxu0 0.0
            %2254 = vmatpush2.msra.mxu0 0.0
            %2255 = vmatprep.subr.mxu0 0.0
            %2256 = vmatpush2.msra.mxu0 0.0
            %2257 = vmatprep.subr.mxu0 0.0
            %2258 = vmatpush2.msra.mxu0 0.0
            %2259 = vmatprep.subr.mxu0 0.0
            %2260 = vmatpush2.msra.mxu0 0.0
            %2261 = vmatprep.subr.mxu0 0.0
            %2262 = vmatpush2.msra.mxu0 0.0
            %2263 = vmatprep.subr.mxu0 0.0
            %2264 = vmatpush2.msra.mxu0 0.0
            %2265 = vmatprep.subr.mxu0 0.0
            %2266 = vmatpush2.msra.mxu0 0.0
            %2267 = vmatprep.mubr.f32.mxu0 0.0
            %2268 = vmatmul.mubr.f32.gmra.mxu0 %v2201
            %v2269 = vpop.f32.mrf.mxu0
            %v2270 = vadd.f32 0.0, %v2269
            %v2271 = vpop.f32.mrf.mxu0
            %v2272 = vadd.f32 0.0, %v2271
            %2273 = vdwg.mxu0
            %2274 = vmatprep.subr.mxu0 0.0
            %2275 = vmatpush1.msra.mxu0 0.0
            %2276 = vmatprep.subr.mxu0 0.0
            %2277 = vmatpush1.msra.mxu0 0.0
            %2278 = vmatprep.subr.mxu0 0.0
            %2279 = vmatpush1.msra.mxu0 0.0
            %2280 = vmatprep.subr.mxu0 0.0
            %2281 = vmatpush1.msra.mxu0 0.0
            %2282 = vmatprep.subr.mxu0 0.0
            %2283 = vmatpush1.msra.mxu0 0.0
            %2284 = vmatprep.subr.mxu0 0.0
            %2285 = vmatpush1.msra.mxu0 0.0
            %2286 = vmatprep.subr.mxu0 0.0
            %2287 = vmatpush1.msra.mxu0 0.0
            %2288 = vmatprep.subr.mxu0 0.0
            %2289 = vmatpush1.msra.mxu0 0.0
            %2290 = vmatprep.subr.mxu0 0.0
            %2291 = vmatpush1.msra.mxu0 0.0
            %2292 = vmatprep.subr.mxu0 0.0
            %2293 = vmatpush1.msra.mxu0 0.0
            %2294 = vmatprep.subr.mxu0 0.0
            %2295 = vmatpush1.msra.mxu0 0.0
            %2296 = vmatprep.subr.mxu0 0.0
            %2297 = vmatpush1.msra.mxu0 0.0
            %2298 = vmatprep.subr.mxu0 %v2195
            %2299 = vmatpush1.msra.mxu0 %v2194
            %2300 = vmatprep.subr.mxu0 %v2187
            %2301 = vmatpush1.msra.mxu0 %v2186
            %2302 = vmatprep.subr.mxu0 %v2179
            %2303 = vmatpush1.msra.mxu0 %v2178
            %2304 = vmatprep.subr.mxu0 %v2171
            %2305 = vmatpush1.msra.mxu0 %v2170
            %2306 = vmatprep.subr.mxu0 0.0
            %2307 = vmatpush2.msra.mxu0 0.0
            %2308 = vmatprep.subr.mxu0 0.0
            %2309 = vmatpush2.msra.mxu0 0.0
            %2310 = vmatprep.subr.mxu0 0.0
            %2311 = vmatpush2.msra.mxu0 0.0
            %2312 = vmatprep.subr.mxu0 0.0
            %2313 = vmatpush2.msra.mxu0 0.0
            %2314 = vmatprep.subr.mxu0 0.0
            %2315 = vmatpush2.msra.mxu0 0.0
            %2316 = vmatprep.subr.mxu0 0.0
            %2317 = vmatpush2.msra.mxu0 0.0
            %2318 = vmatprep.subr.mxu0 0.0
            %2319 = vmatpush2.msra.mxu0 0.0
            %2320 = vmatprep.subr.mxu0 0.0
            %2321 = vmatpush2.msra.mxu0 0.0
            %2322 = vmatprep.subr.mxu0 0.0
            %2323 = vmatpush2.msra.mxu0 0.0
            %2324 = vmatprep.subr.mxu0 0.0
            %2325 = vmatpush2.msra.mxu0 0.0
            %2326 = vmatprep.subr.mxu0 0.0
            %2327 = vmatpush2.msra.mxu0 0.0
            %2328 = vmatprep.subr.mxu0 0.0
            %2329 = vmatpush2.msra.mxu0 0.0
            %2330 = vmatprep.subr.mxu0 0.0
            %2331 = vmatpush2.msra.mxu0 0.0
            %2332 = vmatprep.subr.mxu0 0.0
            %2333 = vmatpush2.msra.mxu0 0.0
            %2334 = vmatprep.subr.mxu0 0.0
            %2335 = vmatpush2.msra.mxu0 0.0
            %2336 = vmatprep.subr.mxu0 0.0
            %2337 = vmatpush2.msra.mxu0 0.0
            %2338 = vmatprep.mubr.f32.mxu0 0.0
            %2339 = vmatmul.mubr.f32.gmra.mxu0 %v2201
            %v2340 = vpop.f32.mrf.mxu0
            %v2341 = vadd.f32 0.0, %v2340
            %v2342 = vpop.f32.mrf.mxu0
            %v2343 = vadd.f32 0.0, %v2342
            %2344 = vdwg.mxu0
            %2345 = vmatprep.subr.mxu0 0.0
            %2346 = vmatpush1.msra.mxu0 0.0
            %2347 = vmatprep.subr.mxu0 0.0
            %2348 = vmatpush1.msra.mxu0 0.0
            %2349 = vmatprep.subr.mxu0 0.0
            %2350 = vmatpush1.msra.mxu0 0.0
            %2351 = vmatprep.subr.mxu0 0.0
            %2352 = vmatpush1.msra.mxu0 0.0
            %2353 = vmatprep.subr.mxu0 0.0
            %2354 = vmatpush1.msra.mxu0 0.0
            %2355 = vmatprep.subr.mxu0 0.0
            %2356 = vmatpush1.msra.mxu0 0.0
            %2357 = vmatprep.subr.mxu0 0.0
            %2358 = vmatpush1.msra.mxu0 0.0
            %2359 = vmatprep.subr.mxu0 0.0
            %2360 = vmatpush1.msra.mxu0 0.0
            %2361 = vmatprep.subr.mxu0 0.0
            %2362 = vmatpush1.msra.mxu0 0.0
            %2363 = vmatprep.subr.mxu0 0.0
            %2364 = vmatpush1.msra.mxu0 0.0
            %2365 = vmatprep.subr.mxu0 0.0
            %2366 = vmatpush1.msra.mxu0 0.0
            %2367 = vmatprep.subr.mxu0 0.0
            %2368 = vmatpush1.msra.mxu0 0.0
            %2369 = vmatprep.subr.mxu0 %v2197
            %2370 = vmatpush1.msra.mxu0 %v2196
            %2371 = vmatprep.subr.mxu0 %v2189
            %2372 = vmatpush1.msra.mxu0 %v2188
            %2373 = vmatprep.subr.mxu0 %v2181
            %2374 = vmatpush1.msra.mxu0 %v2180
            %2375 = vmatprep.subr.mxu0 %v2173
            %2376 = vmatpush1.msra.mxu0 %v2172
            %2377 = vmatprep.subr.mxu0 0.0
            %2378 = vmatpush2.msra.mxu0 0.0
            %2379 = vmatprep.subr.mxu0 0.0
            %2380 = vmatpush2.msra.mxu0 0.0
            %2381 = vmatprep.subr.mxu0 0.0
            %2382 = vmatpush2.msra.mxu0 0.0
            %2383 = vmatprep.subr.mxu0 0.0
            %2384 = vmatpush2.msra.mxu0 0.0
            %2385 = vmatprep.subr.mxu0 0.0
            %2386 = vmatpush2.msra.mxu0 0.0
            %2387 = vmatprep.subr.mxu0 0.0
            %2388 = vmatpush2.msra.mxu0 0.0
            %2389 = vmatprep.subr.mxu0 0.0
            %2390 = vmatpush2.msra.mxu0 0.0
            %2391 = vmatprep.subr.mxu0 0.0
            %2392 = vmatpush2.msra.mxu0 0.0
            %2393 = vmatprep.subr.mxu0 0.0
            %2394 = vmatpush2.msra.mxu0 0.0
            %2395 = vmatprep.subr.mxu0 0.0
            %2396 = vmatpush2.msra.mxu0 0.0
            %2397 = vmatprep.subr.mxu0 0.0
            %2398 = vmatpush2.msra.mxu0 0.0
            %2399 = vmatprep.subr.mxu0 0.0
            %2400 = vmatpush2.msra.mxu0 0.0
            %2401 = vmatprep.subr.mxu0 0.0
            %2402 = vmatpush2.msra.mxu0 0.0
            %2403 = vmatprep.subr.mxu0 0.0
            %2404 = vmatpush2.msra.mxu0 0.0
            %2405 = vmatprep.subr.mxu0 0.0
            %2406 = vmatpush2.msra.mxu0 0.0
            %2407 = vmatprep.subr.mxu0 0.0
            %2408 = vmatpush2.msra.mxu0 0.0
            %2409 = vmatprep.mubr.f32.mxu0 0.0
            %2410 = vmatmul.mubr.f32.gmra.mxu0 %v2201
            %v2411 = vpop.f32.mrf.mxu0
            %v2412 = vadd.f32 0.0, %v2411
            %v2413 = vpop.f32.mrf.mxu0
            %v2414 = vadd.f32 0.0, %v2413
            %2415 = vdwg.mxu0
            %2416 = vmatprep.subr.mxu0 0.0
            %2417 = vmatpush1.msra.mxu0 0.0
            %2418 = vmatprep.subr.mxu0 0.0
            %2419 = vmatpush1.msra.mxu0 0.0
            %2420 = vmatprep.subr.mxu0 0.0
            %2421 = vmatpush1.msra.mxu0 0.0
            %2422 = vmatprep.subr.mxu0 0.0
            %2423 = vmatpush1.msra.mxu0 0.0
            %2424 = vmatprep.subr.mxu0 0.0
            %2425 = vmatpush1.msra.mxu0 0.0
            %2426 = vmatprep.subr.mxu0 0.0
            %2427 = vmatpush1.msra.mxu0 0.0
            %2428 = vmatprep.subr.mxu0 0.0
            %2429 = vmatpush1.msra.mxu0 0.0
            %2430 = vmatprep.subr.mxu0 0.0
            %2431 = vmatpush1.msra.mxu0 0.0
            %2432 = vmatprep.subr.mxu0 0.0
            %2433 = vmatpush1.msra.mxu0 0.0
            %2434 = vmatprep.subr.mxu0 0.0
            %2435 = vmatpush1.msra.mxu0 0.0
            %2436 = vmatprep.subr.mxu0 0.0
            %2437 = vmatpush1.msra.mxu0 0.0
            %2438 = vmatprep.subr.mxu0 0.0
            %2439 = vmatpush1.msra.mxu0 0.0
            %2440 = vmatprep.subr.mxu0 %v2199
            %2441 = vmatpush1.msra.mxu0 %v2198
            %2442 = vmatprep.subr.mxu0 %v2191
            %2443 = vmatpush1.msra.mxu0 %v2190
            %2444 = vmatprep.subr.mxu0 %v2183
            %2445 = vmatpush1.msra.mxu0 %v2182
            %2446 = vmatprep.subr.mxu0 %v2175
            %2447 = vmatpush1.msra.mxu0 %v2174
            %2448 = vmatprep.subr.mxu0 0.0
            %2449 = vmatpush2.msra.mxu0 0.0
            %2450 = vmatprep.subr.mxu0 0.0
            %2451 = vmatpush2.msra.mxu0 0.0
            %2452 = vmatprep.subr.mxu0 0.0
            %2453 = vmatpush2.msra.mxu0 0.0
            %2454 = vmatprep.subr.mxu0 0.0
            %2455 = vmatpush2.msra.mxu0 0.0
            %2456 = vmatprep.subr.mxu0 0.0
            %2457 = vmatpush2.msra.mxu0 0.0
            %2458 = vmatprep.subr.mxu0 0.0
            %2459 = vmatpush2.msra.mxu0 0.0
            %2460 = vmatprep.subr.mxu0 0.0
            %2461 = vmatpush2.msra.mxu0 0.0
            %2462 = vmatprep.subr.mxu0 0.0
            %2463 = vmatpush2.msra.mxu0 0.0
            %2464 = vmatprep.subr.mxu0 0.0
            %2465 = vmatpush2.msra.mxu0 0.0
            %2466 = vmatprep.subr.mxu0 0.0
            %2467 = vmatpush2.msra.mxu0 0.0
            %2468 = vmatprep.subr.mxu0 0.0
            %2469 = vmatpush2.msra.mxu0 0.0
            %2470 = vmatprep.subr.mxu0 0.0
            %2471 = vmatpush2.msra.mxu0 0.0
            %2472 = vmatprep.subr.mxu0 0.0
            %2473 = vmatpush2.msra.mxu0 0.0
            %2474 = vmatprep.subr.mxu0 0.0
            %2475 = vmatpush2.msra.mxu0 0.0
            %2476 = vmatprep.subr.mxu0 0.0
            %2477 = vmatpush2.msra.mxu0 0.0
            %2478 = vmatprep.subr.mxu0 0.0
            %2479 = vmatpush2.msra.mxu0 0.0
            %2480 = vmatprep.mubr.f32.mxu0 0.0
            %2481 = vmatmul.mubr.f32.gmra.mxu0 %v2201
            %v2482 = vpop.f32.mrf.mxu0
            %v2483 = vadd.f32 0.0, %v2482
            %v2484 = vpop.f32.mrf.mxu0
            %v2485 = vadd.f32 0.0, %v2484
            %2486 = vdwg.mxu0
            %v2495 = vcombine.low %v2270, %v2272
            %v2496 = vcombine.low %v2341, %v2343
            %v2497 = vcombine.low %v2412, %v2414
            %v2498 = vcombine.low %v2483, %v2485
            %v2500 = vunpack.c.l.s4 1966171168
            %v2501 = vunpack.c.0.s8 %v2500
            %v2502 = vlaneseq
            %v2503 = vshrl.u32 %v2502, 7
            %v2504 = vsub.s32 %v2501, %v2503
            %v2505 = vrot.slane %v2495, %v2504
            %v2507 = vunpack.c.l.s4 1966171168
            %v2508 = vunpack.c.0.s8 %v2507
            %v2509 = vlaneseq
            %v2510 = vshrl.u32 %v2509, 7
            %v2511 = vsub.s32 %v2508, %v2510
            %v2512 = vrot.slane %v2496, %v2511
            %v2514 = vunpack.c.l.s4 1966171168
            %v2515 = vunpack.c.0.s8 %v2514
            %v2516 = vlaneseq
            %v2517 = vshrl.u32 %v2516, 7
            %v2518 = vsub.s32 %v2515, %v2517
            %v2519 = vrot.slane %v2497, %v2518
            %v2521 = vunpack.c.l.s4 1966171168
            %v2522 = vunpack.c.0.s8 %v2521
            %v2523 = vlaneseq
            %v2524 = vshrl.u32 %v2523, 7
            %v2525 = vsub.s32 %v2522, %v2524
            %v2526 = vrot.slane %v2498, %v2525
            %v2527 = vcombine.low %v2505, %v2512
            %v2528 = vcombine.low %v2519, %v2526
            %v2530 = vunpack.c.l.s4 1966171168
            %v2531 = vunpack.c.0.s8 %v2530
            %v2532 = vlaneseq
            %v2533 = vshrl.u32 %v2532, 7
            %v2534 = vsub.s32 %v2531, %v2533
            %v2535 = vrot.slane %v2527, %v2534
            %v2537 = vunpack.c.l.s4 1966171168
            %v2538 = vunpack.c.0.s8 %v2537
            %v2539 = vlaneseq
            %v2540 = vshrl.u32 %v2539, 7
            %v2541 = vsub.s32 %v2538, %v2540
            %v2542 = vrot.slane %v2528, %v2541
            %v2543 = vcombine.low %v2535, %v2542
            %s2545 = scalar_lea.vmem [#allocation4], 1
            %2546 = vst [vmem:[%s2545] ss:$2 sm:$0xff] %v2543
          $region68: #{tpu_custom_call.1} parent=63 // pred_fallthru
            _
          %s2547 = smul.u32 %s29, 4
          %s2548 = sshra.s32 %s2547, 2
          %s2549 = sand.u32 %s2547, 3
          %s2550 = smul.u32 %s2548, 8
          %s2551 = smul.addr %s2550, 4
          %s2552 = scalar_lea.vmem [#allocation2], %s2551
          %v2553 = vld [vmem:[%s2552] sm:$0xff]
          %v2554 = vld [vmem:[%s2552 + $0x8] sm:$0xff]
          %v2555 = vld [vmem:[%s2552 + $0x10] sm:$0xff]
          %v2556 = vld [vmem:[%s2552 + $0x18] sm:$0xff]
          %v2557 = vld [vmem:[#allocation4] ss:$2 sm:$0xff]
          %v2559 = vlaneseq
          %v2560 = vshrl.u32 %v2559, 7
          %v2561 = vsub.s32 0, %v2560
          %v2562 = vrot.slane %v2557, %v2561
          %v2563 = vlaneseq
          %v2564 = vshrl.u32 %v2563, 7
          %v2565 = vsub.s32 1, %v2564
          %v2566 = vrot.slane %v2557, %v2565
          %v2567 = vlaneseq
          %v2568 = vshrl.u32 %v2567, 7
          %v2569 = vsub.s32 2, %v2568
          %v2570 = vrot.slane %v2557, %v2569
          %v2571 = vlaneseq
          %v2572 = vshrl.u32 %v2571, 7
          %v2573 = vsub.s32 3, %v2572
          %v2574 = vrot.slane %v2557, %v2573
          %v2575 = vlaneseq
          %v2576 = vshrl.u32 %v2575, 7
          %v2577 = vsub.s32 4, %v2576
          %v2578 = vrot.slane %v2557, %v2577
          %v2579 = vlaneseq
          %v2580 = vshrl.u32 %v2579, 7
          %v2581 = vsub.s32 5, %v2580
          %v2582 = vrot.slane %v2557, %v2581
          %v2583 = vlaneseq
          %v2584 = vshrl.u32 %v2583, 7
          %v2585 = vsub.s32 6, %v2584
          %v2586 = vrot.slane %v2557, %v2585
          %v2587 = vlaneseq
          %v2588 = vshrl.u32 %v2587, 7
          %v2589 = vsub.s32 7, %v2588
          %v2590 = vrot.slane %v2557, %v2589
          %v2591 = vcombine.low %v2562, %v2566
          %v2592 = vcombine.low %v2570, %v2574
          %v2593 = vcombine.low %v2578, %v2582
          %v2594 = vcombine.low %v2586, %v2590
          %v2599 = vmul.f32 %v2553, %v2591
          %v2600 = vmul.f32 %v2554, %v2592
          %v2601 = vmul.f32 %v2555, %v2593
          %v2602 = vmul.f32 %v2556, %v2594
          %s2603 = scalar_lea.vmem [#allocation4], 1
          %v2604 = vld [vmem:[%s2603] ss:$2 sm:$0xff]
          %v2606 = vlaneseq
          %v2607 = vshrl.u32 %v2606, 7
          %v2608 = vsub.s32 0, %v2607
          %v2609 = vrot.slane %v2604, %v2608
          %v2610 = vlaneseq
          %v2611 = vshrl.u32 %v2610, 7
          %v2612 = vsub.s32 1, %v2611
          %v2613 = vrot.slane %v2604, %v2612
          %v2614 = vlaneseq
          %v2615 = vshrl.u32 %v2614, 7
          %v2616 = vsub.s32 2, %v2615
          %v2617 = vrot.slane %v2604, %v2616
          %v2618 = vlaneseq
          %v2619 = vshrl.u32 %v2618, 7
          %v2620 = vsub.s32 3, %v2619
          %v2621 = vrot.slane %v2604, %v2620
          %v2622 = vlaneseq
          %v2623 = vshrl.u32 %v2622, 7
          %v2624 = vsub.s32 4, %v2623
          %v2625 = vrot.slane %v2604, %v2624
          %v2626 = vlaneseq
          %v2627 = vshrl.u32 %v2626, 7
          %v2628 = vsub.s32 5, %v2627
          %v2629 = vrot.slane %v2604, %v2628
          %v2630 = vlaneseq
          %v2631 = vshrl.u32 %v2630, 7
          %v2632 = vsub.s32 6, %v2631
          %v2633 = vrot.slane %v2604, %v2632
          %v2634 = vlaneseq
          %v2635 = vshrl.u32 %v2634, 7
          %v2636 = vsub.s32 7, %v2635
          %v2637 = vrot.slane %v2604, %v2636
          %v2638 = vcombine.low %v2609, %v2613
          %v2639 = vcombine.low %v2617, %v2621
          %v2640 = vcombine.low %v2625, %v2629
          %v2641 = vcombine.low %v2633, %v2637
          %v2646 = vadd.f32 %v2599, %v2638
          %v2647 = vadd.f32 %v2600, %v2639
          %v2648 = vadd.f32 %v2601, %v2640
          %v2649 = vadd.f32 %v2602, %v2641
          %v2650 = vmax.f32 %v2646, 0.0
          %v2651 = vmax.f32 %v2647, 0.0
          %v2652 = vmax.f32 %v2648, 0.0
          %v2653 = vmax.f32 %v2649, 0.0
          %2654 = vst [vmem:[%s299] sm:$0xff] %v2650
          %2655 = vst [vmem:[%s299 + $0x8] sm:$0xff] %v2651
          %2656 = vst [vmem:[%s299 + $0x10] sm:$0xff] %v2652
          %2657 = vst [vmem:[%s299 + $0x18] sm:$0xff] %v2653
        $region64: #{tpu_custom_call.1} parent=43 // pred_fallthru
          _
        %s2658 = sand.u32 %s181, 1
        %s2659 = scalar_lea.sflag [#allocation7], %s2658
        %s2660 = sand.u32 %s181, 1
        %s2661 = smul.addr %s2660, 32
        %s2662 = scalar_lea.vmem [#allocation10], %s2661
        // Predicated region
        $region69: #{tpu_custom_call.1} parent=43 // pred_check
          %p2663 = pneg %p191
        $region70: #{tpu_custom_call.1} parent=43 // pred_check_branch
          %2665 = sbr.rel (%p2663) target = $region72
        $region71: #{tpu_custom_call.1} parent=43 // pred_region
          %s2666 = smul.u32 %s29, %s28
          %s2668 = ssub.s32 512, 512
          %2669 = vsyncadd %s2659, %s2668
          %s2670 = smul.addr %s2666, 8
          %s2671 = smul.addr %s2670, 64
          %s2672 = scalar_lea.hbm %s6, %s2671
          %s2674 = sshll.u32 %s2662, 4
          %s2675 = int_to_ptr.vmem [resolvable:$true] %s2674
          %2677 = dma.vmem_to_hbm [thread:$0]  %s2675, 512, %s2672, %s2659
        $region72: #{tpu_custom_call.1} parent=43 // pred_fallthru
          _
      $region44: #{tpu_custom_call.1} parent=5 // pred_fallthru
        _
      %p2678 = scmp.le.s32.totalorder 2, %s19
      // Predicated region
      $region73: #{tpu_custom_call.1} parent=5 // pred_check
        %p2679 = pneg %p2678
      $region74: #{tpu_custom_call.1} parent=5 // pred_check_branch
        %2681 = sbr.rel (%p2679) target = $region76
      $region75: #{tpu_custom_call.1} parent=5 // pred_region
        %s2682 = ssub.s32 %s19, 2
        // Predicated region
        $region77: #{tpu_custom_call.1} parent=75 // pred_check
          %p2683 = pneg %p197
        $region78: #{tpu_custom_call.1} parent=75 // pred_check_branch
          %2685 = sbr.rel (%p2683) target = $region80
        $region79: #{tpu_custom_call.1} parent=75 // pred_region
          %s2686 = sand.u32 %s182, 1
          %s2687 = scalar_lea.sflag [#allocation7], %s2686
          %s2688 = sand.u32 %s182, 1
          %s2689 = smul.addr %s2688, 32
          %s2690 = scalar_lea.vmem [#allocation10], %s2689
          %2691 = dma.done %s2687, 512
        $region80: #{tpu_custom_call.1} parent=75 // pred_fallthru
          _
      $region76: #{tpu_custom_call.1} parent=5 // pred_fallthru
        _
    $region6: #{tpu_custom_call.1} parent=1 // loop_footer
      %s23 = sadd.s32 1, %s19
    $region7: #{tpu_custom_call.1} parent=1 // loop_footer_branch
      %18 = sbr.rel target = $region3
    $region8: #{tpu_custom_call.1} parent=1 // loop_exit
      _
    %2692 = vsyncpa [#allocation6], 1
    %s2693 = scalar_lea.sflag [#allocation6], 1
    %2694 = vsyncpa %s2693, 1
    %2695 = vsyncpa [#allocation9], 1
    %2696 = vsyncpa [#allocation7], 1
    %s2697 = scalar_lea.sflag [#allocation7], 1
    %2698 = vsyncpa %s2697, 1

</llo_original>
